<compile_context>
chip_gen: v7x
topology: tpu7x:2x2x1
jax: 0.10.0
libtpu: 0.0.40
codegen_flags: <defaults>
</compile_context>

<pallas_src>
import math

import jax
import jax.numpy as jnp
from jax.experimental import pallas as pl
from jax.experimental.pallas import tpu as pltpu

DEFAULT_TILE_B = 256   # batch rows per grid step; multiple of 256 (MXU M on v6e/v7x)
OUT_PAD = 128          # lane-dense padded logit width for the padded output layout
NEG_BIG = -1e30        # f32 bias on padded logit columns -> exp underflows to exactly 0


def actor_kernel(x_ref, w1_ref, b1_ref, w2_ref, b2_ref, w3_ref, b3_ref, out_ref):
    x = x_ref[...]                       # [tile_b, in_dim] f32
    in_dim = x.shape[1]

    # --- fc1 + ReLU --------------------------------------------------------
    # K = in_dim is tiny; a matmul would use <2% of the MXU depth, so compute
    # it as in_dim broadcast-FMAs on the VPU (exact f32, no operand cast).
    if in_dim <= 16:
        w1 = w1_ref[...]                 # [in_dim, hidden]
        h1 = x[:, 0:1] * w1[0:1, :]
        for k in range(1, in_dim):       # static unroll
            h1 = h1 + x[:, k:k + 1] * w1[k:k + 1, :]
        h1 = h1 + b1_ref[...]
    else:
        h1 = jnp.dot(x, w1_ref[...],
                     preferred_element_type=jnp.float32) + b1_ref[...]
    h1 = jnp.maximum(h1, 0.0)

    # --- fc2 + ReLU (MXU, f32 accumulate) -----------------------------------
    h2 = jnp.dot(h1, w2_ref[...], preferred_element_type=jnp.float32) + b2_ref[...]
    h2 = jnp.maximum(h2, 0.0)

    # --- fc3 (padded to OUT_PAD lanes) + numerically stable softmax (dim=1) --
    # Padded columns carry f32 bias NEG_BIG, so exp(logit - m) == 0 there and
    # the normalization only sees the real output columns.
    logits = jnp.dot(h2, w3_ref[...], preferred_element_type=jnp.float32) + b3_ref[...]
    m = jnp.max(logits, axis=1, keepdims=True)
    e = jnp.exp(logits - m)
    denom = jnp.sum(e, axis=1, keepdims=True)
    probs = e / denom                    # exact divide: rows sum to 1 (to f32 rounding)

    # out_ref is either [tile_b, OUT_PAD] (lane-dense) or [tile_b, out_dim] (narrow).
    out_ref[...] = probs[:, :out_ref.shape[1]].astype(out_ref.dtype)


def actor_forward(x, kernel_params, out_dim, *, tile_b=DEFAULT_TILE_B,
                  lane_dense_out=True):
    """x: [B, input_dim] f32 -> probs: [B, out_dim] f32.

    lane_dense_out=True : padded [*, 128] output slab, unmasked stores (default).
    lane_dense_out=False: narrow [*, out_dim] output, masked stores but ~64x less
                          output HBM writeback -- useful for very large batches.
    """
    w1, b1, w2, b2, w3p, b3p = kernel_params
    B, in_dim = x.shape

    # Bucketize the batch to a fixed multiple of tile_b (one compiled kernel
    # per bucket; keeps M aligned to the MXU granularity).
    num_tiles = max(1, pl.cdiv(B, tile_b))
    B_pad = num_tiles * tile_b
    if B_pad != B:
        x = jnp.pad(x, ((0, B_pad - B), (0, 0)))

    out_w = OUT_PAD if lane_dense_out else out_dim

    def resident(a):
        # Whole-array block with a constant index_map: DMA'd once, stays in
        # VMEM across all grid steps. Single-buffered -> no dead second buffer.
        return pl.BlockSpec(a.shape, lambda i: (0, 0),
                            pipeline_mode=pl.Buffered(1))

    out = pl.pallas_call(
        actor_kernel,
        out_shape=jax.ShapeDtypeStruct((B_pad, out_w), jnp.float32),
        grid_spec=pltpu.PrefetchScalarGridSpec(
            num_scalar_prefetch=0,
            grid=(num_tiles,),
            in_specs=[
                pl.BlockSpec((tile_b, in_dim), lambda i: (i, 0)),  # x tiles
                resident(w1), resident(b1),
                resident(w2), resident(b2),
                resident(w3p), resident(b3p),
            ],
            out_specs=pl.BlockSpec((tile_b, out_w), lambda i: (i, 0)),
        ),
        compiler_params=pltpu.CompilerParams(
            dimension_semantics=("parallel",),  # v7x: shard batch tiles over both TCs
        ),
    )(x, w1, b1, w2, b2, w3p, b3p)

    if lane_dense_out:
        return out[:B, :out_dim]
    return out[:B]


def init_actor_params(key, input_dim=4, hidden_dim=256, output_dim=2):
    """Deterministic init mimicking PyTorch nn.Linear defaults:
    U(-1/sqrt(fan_in), 1/sqrt(fan_in)). Weights stored [in, out], biases [1, out]."""
    ks = jax.random.split(key, 6)

    def linear(kw, kb, fan_in, fan_out):
        bound = 1.0 / math.sqrt(fan_in)
        w = jax.random.uniform(kw, (fan_in, fan_out), jnp.float32, -bound, bound)
        b = jax.random.uniform(kb, (1, fan_out), jnp.float32, -bound, bound)
        return w, b

    w1, b1 = linear(ks[0], ks[1], input_dim, hidden_dim)
    w2, b2 = linear(ks[2], ks[3], hidden_dim, hidden_dim)
    w3, b3 = linear(ks[4], ks[5], hidden_dim, output_dim)
    return (w1, b1, w2, b2, w3, b3)


def prepare_kernel_params(params, out_pad=OUT_PAD):
    """Keep weights in f32 (parity with the PyTorch module; DMA is one-shot and
    negligible) and lane-pad the output head to out_pad columns."""
    w1, b1, w2, b2, w3, b3 = params
    out_dim = w3.shape[1]
    w3p = jnp.zeros((w3.shape[0], out_pad), jnp.float32).at[:, :out_dim].set(w3)
    b3p = jnp.full((1, out_pad), NEG_BIG, jnp.float32).at[:, :out_dim].set(b3)  # stays f32
    return (w1, b1, w2, b2, w3p, b3p)


def _reference(x, params):
    """Plain-JAX f32 reference (matches the PyTorch Actor forward)."""
    w1, b1, w2, b2, w3, b3 = params
    h1 = jnp.maximum(x @ w1 + b1, 0.0)
    h2 = jnp.maximum(h1 @ w2 + b2, 0.0)
    return jax.nn.softmax(h2 @ w3 + b3, axis=1)


if __name__ == "__main__":
    key = jax.random.PRNGKey(0)
    k_params, k_x1, k_x2 = jax.random.split(key, 3)

    input_dim, hidden_dim, output_dim = 4, 256, 2
    params = init_actor_params(k_params, input_dim, hidden_dim, output_dim)
    kparams = prepare_kernel_params(params)

    # Small rollout-style batch: pads to a single 256-row tile (lane-dense out).
    x_small = jax.random.normal(k_x1, (8, input_dim), dtype=jnp.float32)
    probs_small = jax.block_until_ready(actor_forward(x_small, kparams, output_dim))

    # Larger batch: 2 x 256-row tiles on a "parallel" grid axis (both TCs on
    # v7x); exercises the narrow output layout that minimizes HBM writeback.
    x_big = jax.random.normal(k_x2, (260, input_dim), dtype=jnp.float32)
    probs_big = jax.block_until_ready(
        actor_forward(x_big, kparams, output_dim, lane_dense_out=False))

    for x, probs in ((x_small, probs_small), (x_big, probs_big)):
        ref = _reference(x, params)
        assert probs.shape == (x.shape[0], output_dim)
        # Loose tol covers possible multi-pass bf16 MXU handling of f32 matmuls
        # on hardware; interpret mode is exact f32.
        assert jnp.allclose(probs, ref, atol=2e-2), "mismatch vs f32 reference"
        # Exact divide in the kernel -> rows sum to 1 to f32 rounding.
        assert jnp.allclose(jnp.sum(probs, axis=1), 1.0, atol=1e-3)

    print("KERNEL_OK")
</pallas_src>

<mosaic_0001>
module attributes {stable_mosaic.version = 11 : i64} {
  func.func @actor_kernel(%arg0: i32, %arg1: memref<256x4xf32, #tpu.memory_space<vmem>>, %arg2: memref<4x256xf32, #tpu.memory_space<vmem>>, %arg3: memref<1x256xf32, #tpu.memory_space<vmem>>, %arg4: memref<256x256xf32, #tpu.memory_space<vmem>>, %arg5: memref<1x256xf32, #tpu.memory_space<vmem>>, %arg6: memref<256x128xf32, #tpu.memory_space<vmem>>, %arg7: memref<1x128xf32, #tpu.memory_space<vmem>>, %arg8: memref<256x128xf32, #tpu.memory_space<vmem>>) attributes {dimension_semantics = [#tpu.dimension_semantics<parallel>], iteration_bounds = array<i64: 1>, scalar_prefetch = 0 : i64, scratch_operands = 0 : i64, tpu.core_type = #tpu.core_type<tc>, window_params = [{transform_indices = @transform_0, window_bounds = array<i64: 256, 4>}, {pipeline_mode = #tpu.pipeline_mode<synchronous>, transform_indices = @transform_1, window_bounds = array<i64: 4, 256>}, {pipeline_mode = #tpu.pipeline_mode<synchronous>, transform_indices = @transform_2, window_bounds = array<i64: 1, 256>}, {pipeline_mode = #tpu.pipeline_mode<synchronous>, transform_indices = @transform_3, window_bounds = array<i64: 256, 256>}, {pipeline_mode = #tpu.pipeline_mode<synchronous>, transform_indices = @transform_4, window_bounds = array<i64: 1, 256>}, {pipeline_mode = #tpu.pipeline_mode<synchronous>, transform_indices = @transform_5, window_bounds = array<i64: 256, 128>}, {pipeline_mode = #tpu.pipeline_mode<synchronous>, transform_indices = @transform_6, window_bounds = array<i64: 1, 128>}, {transform_indices = @transform_7, window_bounds = array<i64: 256, 128>}]} {
    %c0 = arith.constant 0 : index
    %c0_0 = arith.constant 0 : index
    %0 = vector.load %arg1[%c0, %c0_0] : memref<256x4xf32, #tpu.memory_space<vmem>>, vector<256x4xf32>
    %c0_1 = arith.constant 0 : index
    %c0_2 = arith.constant 0 : index
    %1 = vector.load %arg2[%c0_1, %c0_2] : memref<4x256xf32, #tpu.memory_space<vmem>>, vector<4x256xf32>
    %2 = vector.extract_strided_slice %0 {offsets = [0, 0], sizes = [256, 1], strides = [1, 1]} : vector<256x4xf32> to vector<256x1xf32>
    %3 = vector.extract_strided_slice %1 {offsets = [0, 0], sizes = [1, 256], strides = [1, 1]} : vector<4x256xf32> to vector<1x256xf32>
    %4 = vector.broadcast %2 : vector<256x1xf32> to vector<256x256xf32>
    %5 = vector.broadcast %3 : vector<1x256xf32> to vector<256x256xf32>
    %6 = arith.mulf %4, %5 : vector<256x256xf32>
    %7 = vector.extract_strided_slice %0 {offsets = [0, 1], sizes = [256, 1], strides = [1, 1]} : vector<256x4xf32> to vector<256x1xf32>
    %8 = vector.extract_strided_slice %1 {offsets = [1, 0], sizes = [1, 256], strides = [1, 1]} : vector<4x256xf32> to vector<1x256xf32>
    %9 = vector.broadcast %7 : vector<256x1xf32> to vector<256x256xf32>
    %10 = vector.broadcast %8 : vector<1x256xf32> to vector<256x256xf32>
    %11 = arith.mulf %9, %10 : vector<256x256xf32>
    %12 = arith.addf %6, %11 : vector<256x256xf32>
    %13 = vector.extract_strided_slice %0 {offsets = [0, 2], sizes = [256, 1], strides = [1, 1]} : vector<256x4xf32> to vector<256x1xf32>
    %14 = vector.extract_strided_slice %1 {offsets = [2, 0], sizes = [1, 256], strides = [1, 1]} : vector<4x256xf32> to vector<1x256xf32>
    %15 = vector.broadcast %13 : vector<256x1xf32> to vector<256x256xf32>
    %16 = vector.broadcast %14 : vector<1x256xf32> to vector<256x256xf32>
    %17 = arith.mulf %15, %16 : vector<256x256xf32>
    %18 = arith.addf %12, %17 : vector<256x256xf32>
    %19 = vector.extract_strided_slice %0 {offsets = [0, 3], sizes = [256, 1], strides = [1, 1]} : vector<256x4xf32> to vector<256x1xf32>
    %20 = vector.extract_strided_slice %1 {offsets = [3, 0], sizes = [1, 256], strides = [1, 1]} : vector<4x256xf32> to vector<1x256xf32>
    %21 = vector.broadcast %19 : vector<256x1xf32> to vector<256x256xf32>
    %22 = vector.broadcast %20 : vector<1x256xf32> to vector<256x256xf32>
    %23 = arith.mulf %21, %22 : vector<256x256xf32>
    %24 = arith.addf %18, %23 : vector<256x256xf32>
    %c0_3 = arith.constant 0 : index
    %c0_4 = arith.constant 0 : index
    %25 = vector.load %arg3[%c0_3, %c0_4] : memref<1x256xf32, #tpu.memory_space<vmem>>, vector<1x256xf32>
    %26 = vector.broadcast %25 : vector<1x256xf32> to vector<256x256xf32>
    %27 = arith.addf %24, %26 : vector<256x256xf32>
    %cst = arith.constant 0.000000e+00 : f32
    %28 = vector.broadcast %cst : f32 to vector<256x256xf32>
    %29 = arith.maximumf %27, %28 : vector<256x256xf32>
    %c0_5 = arith.constant 0 : index
    %c0_6 = arith.constant 0 : index
    %30 = vector.load %arg4[%c0_5, %c0_6] : memref<256x256xf32, #tpu.memory_space<vmem>>, vector<256x256xf32>
    %cst_7 = arith.constant dense<0.000000e+00> : vector<256x256xf32>
    %31 = tpu.matmul %29, %30, %cst_7 {dimension_numbers = #tpu.dot_dimension_numbers<[1], [0], [0], [1], [0, 0, 1, 1], [], []>} : vector<256x256xf32>, vector<256x256xf32>, vector<256x256xf32> -> vector<256x256xf32>
    %c0_8 = arith.constant 0 : index
    %c0_9 = arith.constant 0 : index
    %32 = vector.load %arg5[%c0_8, %c0_9] : memref<1x256xf32, #tpu.memory_space<vmem>>, vector<1x256xf32>
    %33 = vector.broadcast %32 : vector<1x256xf32> to vector<256x256xf32>
    %34 = arith.addf %31, %33 : vector<256x256xf32>
    %cst_10 = arith.constant 0.000000e+00 : f32
    %35 = vector.broadcast %cst_10 : f32 to vector<256x256xf32>
    %36 = arith.maximumf %34, %35 : vector<256x256xf32>
    %c0_11 = arith.constant 0 : index
    %c0_12 = arith.constant 0 : index
    %37 = vector.load %arg6[%c0_11, %c0_12] : memref<256x128xf32, #tpu.memory_space<vmem>>, vector<256x128xf32>
    %cst_13 = arith.constant dense<0.000000e+00> : vector<256x128xf32>
    %38 = tpu.matmul %36, %37, %cst_13 {dimension_numbers = #tpu.dot_dimension_numbers<[1], [0], [0], [1], [0, 0, 1, 1], [], []>} : vector<256x256xf32>, vector<256x128xf32>, vector<256x128xf32> -> vector<256x128xf32>
    %c0_14 = arith.constant 0 : index
    %c0_15 = arith.constant 0 : index
    %39 = vector.load %arg7[%c0_14, %c0_15] : memref<1x128xf32, #tpu.memory_space<vmem>>, vector<1x128xf32>
    %40 = vector.broadcast %39 : vector<1x128xf32> to vector<256x128xf32>
    %41 = arith.addf %38, %40 : vector<256x128xf32>
    %cst_16 = arith.constant dense<0xFF800000> : vector<256xf32>
    %42 = vector.multi_reduction <maximumf>, %41, %cst_16 [1] : vector<256x128xf32> to vector<256xf32>
    %43 = vector.shape_cast %42 : vector<256xf32> to vector<256x1xf32>
    %44 = vector.broadcast %43 : vector<256x1xf32> to vector<256x128xf32>
    %45 = arith.subf %41, %44 : vector<256x128xf32>
    %46 = math.exp %45 : vector<256x128xf32>
    %cst_17 = arith.constant dense<0.000000e+00> : vector<256xf32>
    %47 = vector.multi_reduction <add>, %46, %cst_17 [1] : vector<256x128xf32> to vector<256xf32>
    %48 = vector.shape_cast %47 : vector<256xf32> to vector<256x1xf32>
    %49 = vector.broadcast %48 : vector<256x1xf32> to vector<256x128xf32>
    %50 = arith.divf %46, %49 : vector<256x128xf32>
    %c0_18 = arith.constant 0 : index
    %c0_19 = arith.constant 0 : index
    %51 = vector.load %arg8[%c0_18, %c0_19] : memref<256x128xf32, #tpu.memory_space<vmem>>, vector<256x128xf32>
    tpu.vector_store %arg8[%c0_18, %c0_19], %50 {strides = array<i32>} : memref<256x128xf32, #tpu.memory_space<vmem>>, vector<256x128xf32>,
    return
  }
  func.func @transform_0(%arg0: i32) -> (i32, i32) {
    %c0_i32 = arith.constant 0 : i32
    %c0_i32_0 = arith.constant 0 : i32
    return %arg0, %c0_i32 : i32, i32
  }
  func.func @transform_1(%arg0: i32) -> (i32, i32) {
    %c0_i32 = arith.constant 0 : i32
    %c0_i32_0 = arith.constant 0 : i32
    %c0_i32_1 = arith.constant 0 : i32
    return %c0_i32, %c0_i32_0 : i32, i32
  }
  func.func @transform_2(%arg0: i32) -> (i32, i32) {
    %c0_i32 = arith.constant 0 : i32
    %c0_i32_0 = arith.constant 0 : i32
    %c0_i32_1 = arith.constant 0 : i32
    return %c0_i32, %c0_i32_0 : i32, i32
  }
  func.func @transform_3(%arg0: i32) -> (i32, i32) {
    %c0_i32 = arith.constant 0 : i32
    %c0_i32_0 = arith.constant 0 : i32
    %c0_i32_1 = arith.constant 0 : i32
    return %c0_i32, %c0_i32_0 : i32, i32
  }
  func.func @transform_4(%arg0: i32) -> (i32, i32) {
    %c0_i32 = arith.constant 0 : i32
    %c0_i32_0 = arith.constant 0 : i32
    %c0_i32_1 = arith.constant 0 : i32
    return %c0_i32, %c0_i32_0 : i32, i32
  }
  func.func @transform_5(%arg0: i32) -> (i32, i32) {
    %c0_i32 = arith.constant 0 : i32
    %c0_i32_0 = arith.constant 0 : i32
    %c0_i32_1 = arith.constant 0 : i32
    return %c0_i32, %c0_i32_0 : i32, i32
  }
  func.func @transform_6(%arg0: i32) -> (i32, i32) {
    %c0_i32 = arith.constant 0 : i32
    %c0_i32_0 = arith.constant 0 : i32
    %c0_i32_1 = arith.constant 0 : i32
    return %c0_i32, %c0_i32_0 : i32, i32
  }
  func.func @transform_7(%arg0: i32) -> (i32, i32) {
    %c0_i32 = arith.constant 0 : i32
    %c0_i32_0 = arith.constant 0 : i32
    return %arg0, %c0_i32 : i32, i32
  }
}

</mosaic_0001>

<llo_original>
// kernel: tpu_custom_call.1
$region0: #{tpu_custom_call.1}
  #allocation0 [shape = 'u32[]', space=smem, size = 0x4, offset = 0x4, fixed_abs, tag = 'smem constant byte address 0x4 - core index']
  #allocation1 [shape = 'u32[144,128]{1,0:T(1,128)}', space=vmem, size = 0x12000, scoped, tag = 'internal scratch']
  %s0 = inlined_call_operand.vmem [shape: f32[256,4], index: 0, kind: input, shape index: {}]
  %s1 = inlined_call_operand.vmem [shape: f32[4,256], index: 1, kind: input, shape index: {}]
  %s2 = inlined_call_operand.vmem [shape: f32[1,256], index: 2, kind: input, shape index: {}]
  %s3 = inlined_call_operand.hbm [shape: f32[256,256], index: 3, kind: input, shape index: {}]
  %s4 = inlined_call_operand.vmem [shape: f32[1,256], index: 4, kind: input, shape index: {}]
  %s5 = inlined_call_operand.vmem [shape: f32[256,128], index: 5, kind: input, shape index: {}]
  %s6 = inlined_call_operand.vmem [shape: f32[1,128], index: 6, kind: input, shape index: {}]
  %s7 = inlined_call_operand.hbm [shape: f32[256,128], index: 7, kind: output, shape index: {}]
  %s8 = sld [smem:[#allocation0]]
  $region42: #{tpu_custom_call.1} parent=0
    _
  %s10 = ssub.s32 1, %s8
  %s11 = scalar_select 0, %s10, %s8
  $region1: #{tpu_custom_call.1} parent=0
    #allocation2 [shape = 'u8[262144]{0}', space=vmem, size = 0x40000, scoped, tag = 'input window, operand 3, single buffered']
    #allocation3 [shape = 's32[1]{0}', space=sflag, size = 0x4, scoped, tag = 'scoped memory for tpu_custom_call.1']
    #allocation4 [shape = 's32[1]{0}', space=sflag, size = 0x4, scoped, tag = 'scoped memory for tpu_custom_call.1']
    #allocation5 [shape = 'u8[131072]{0}', space=vmem, size = 0x20000, scoped, tag = 'output window, operand 0, single buffered']
    %12 = vsyncpa [#allocation3], 0
    %13 = vsyncpa [#allocation4], 0
    // Predicated region
    $region2: #{tpu_custom_call.1} parent=1 // pred_check
      _
    $region3: #{tpu_custom_call.1} parent=1 // pred_check_branch
      %15 = sbr.rel (0) target = $region5
    $region4: #{tpu_custom_call.1} parent=1 // pred_region
      _
    $region5: #{tpu_custom_call.1} parent=1 // pred_fallthru
      _
    // Predicated region
    $region6: #{tpu_custom_call.1} parent=1 // pred_check
      _
    $region7: #{tpu_custom_call.1} parent=1 // pred_check_branch
      %17 = sbr.rel (0) target = $region9
    $region8: #{tpu_custom_call.1} parent=1 // pred_region
      _
    $region9: #{tpu_custom_call.1} parent=1 // pred_fallthru
      _
    // Predicated region
    $region10: #{tpu_custom_call.1} parent=1 // pred_check
      _
    $region11: #{tpu_custom_call.1} parent=1 // pred_check_branch
      %19 = sbr.rel (0) target = $region13
    $region12: #{tpu_custom_call.1} parent=1 // pred_region
      _
    $region13: #{tpu_custom_call.1} parent=1 // pred_fallthru
      _
    // Predicated region
    $region14: #{tpu_custom_call.1} parent=1 // pred_check
      _
    $region15: #{tpu_custom_call.1} parent=1 // pred_check_branch
      %21 = sbr.rel (0) target = $region17
    $region16: #{tpu_custom_call.1} parent=1 // pred_region
      %s23 = ssub.s32 8192, 8192
      %24 = vsyncadd [#allocation3], %s23
      %s25 = sshll.u32 [#allocation2], 4
      %s26 = int_to_ptr.vmem [resolvable:$true] %s25
      %31 = dma.hbm_to_vmem [thread:$0]  %s3, 8192, %s26, [#allocation3], 256, 256, 16
    $region17: #{tpu_custom_call.1} parent=1 // pred_fallthru
      _
    // Predicated region
    $region18: #{tpu_custom_call.1} parent=1 // pred_check
      _
    $region19: #{tpu_custom_call.1} parent=1 // pred_check_branch
      %33 = sbr.rel (0) target = $region21
    $region20: #{tpu_custom_call.1} parent=1 // pred_region
      _
    $region21: #{tpu_custom_call.1} parent=1 // pred_fallthru
      _
    // Predicated region
    $region22: #{tpu_custom_call.1} parent=1 // pred_check
      _
    $region23: #{tpu_custom_call.1} parent=1 // pred_check_branch
      %35 = sbr.rel (0) target = $region25
    $region24: #{tpu_custom_call.1} parent=1 // pred_region
      _
    $region25: #{tpu_custom_call.1} parent=1 // pred_fallthru
      _
    // Predicated region
    $region26: #{tpu_custom_call.1} parent=1 // pred_check
      _
    $region27: #{tpu_custom_call.1} parent=1 // pred_check_branch
      %37 = sbr.rel (0) target = $region29
    $region28: #{tpu_custom_call.1} parent=1 // pred_region
      _
    $region29: #{tpu_custom_call.1} parent=1 // pred_fallthru
      _
    // Predicated region
    $region30: #{tpu_custom_call.1} parent=1 // pred_check
      _
    $region31: #{tpu_custom_call.1} parent=1 // pred_check_branch
      %39 = sbr.rel (0) target = $region33
    $region32: #{tpu_custom_call.1} parent=1 // pred_region
      %40 = dma.done [#allocation3], 8192
    $region33: #{tpu_custom_call.1} parent=1 // pred_fallthru
      _
    %v41 = vld [vmem:[%s0] sm:$0xff]
    %v42 = vld [vmem:[%s0 + $0x8] sm:$0xff]
    %v43 = vld [vmem:[%s0 + $0x10] sm:$0xff]
    %v44 = vld [vmem:[%s0 + $0x18] sm:$0xff]
    %v45 = vld [vmem:[%s0 + $0x20] sm:$0xff]
    %v46 = vld [vmem:[%s0 + $0x28] sm:$0xff]
    %v47 = vld [vmem:[%s0 + $0x30] sm:$0xff]
    %v48 = vld [vmem:[%s0 + $0x38] sm:$0xff]
    %v49 = vld [vmem:[%s0 + $0x40] sm:$0xff]
    %v50 = vld [vmem:[%s0 + $0x48] sm:$0xff]
    %v51 = vld [vmem:[%s0 + $0x50] sm:$0xff]
    %v52 = vld [vmem:[%s0 + $0x58] sm:$0xff]
    %v53 = vld [vmem:[%s0 + $0x60] sm:$0xff]
    %v54 = vld [vmem:[%s0 + $0x68] sm:$0xff]
    %v55 = vld [vmem:[%s0 + $0x70] sm:$0xff]
    %v56 = vld [vmem:[%s0 + $0x78] sm:$0xff]
    %v57 = vld [vmem:[%s0 + $0x80] sm:$0xff]
    %v58 = vld [vmem:[%s0 + $0x88] sm:$0xff]
    %v59 = vld [vmem:[%s0 + $0x90] sm:$0xff]
    %v60 = vld [vmem:[%s0 + $0x98] sm:$0xff]
    %v61 = vld [vmem:[%s0 + $0xa0] sm:$0xff]
    %v62 = vld [vmem:[%s0 + $0xa8] sm:$0xff]
    %v63 = vld [vmem:[%s0 + $0xb0] sm:$0xff]
    %v64 = vld [vmem:[%s0 + $0xb8] sm:$0xff]
    %v65 = vld [vmem:[%s0 + $0xc0] sm:$0xff]
    %v66 = vld [vmem:[%s0 + $0xc8] sm:$0xff]
    %v67 = vld [vmem:[%s0 + $0xd0] sm:$0xff]
    %v68 = vld [vmem:[%s0 + $0xd8] sm:$0xff]
    %v69 = vld [vmem:[%s0 + $0xe0] sm:$0xff]
    %v70 = vld [vmem:[%s0 + $0xe8] sm:$0xff]
    %v71 = vld [vmem:[%s0 + $0xf0] sm:$0xff]
    %v72 = vld [vmem:[%s0 + $0xf8] sm:$0xff]
    %v73 = vld [vmem:[%s1] sm:$0xff]
    %75 = vset.pattern.permute.xlu0 0
    %76 = vperm.xlu0 %75, %v41
    %v77 = vpop.permute.xlu0 %76
    %80 = vset.pattern.permute.xlu0 0
    %81 = vperm.xlu0 %80, %v42
    %v82 = vpop.permute.xlu0 %81
    %85 = vset.pattern.permute.xlu0 0
    %86 = vperm.xlu0 %85, %v43
    %v87 = vpop.permute.xlu0 %86
    %90 = vset.pattern.permute.xlu0 0
    %91 = vperm.xlu0 %90, %v44
    %v92 = vpop.permute.xlu0 %91
    %95 = vset.pattern.permute.xlu0 0
    %96 = vperm.xlu0 %95, %v45
    %v97 = vpop.permute.xlu0 %96
    %100 = vset.pattern.permute.xlu0 0
    %101 = vperm.xlu0 %100, %v46
    %v102 = vpop.permute.xlu0 %101
    %105 = vset.pattern.permute.xlu0 0
    %106 = vperm.xlu0 %105, %v47
    %v107 = vpop.permute.xlu0 %106
    %110 = vset.pattern.permute.xlu0 0
    %111 = vperm.xlu0 %110, %v48
    %v112 = vpop.permute.xlu0 %111
    %115 = vset.pattern.permute.xlu0 0
    %116 = vperm.xlu0 %115, %v49
    %v117 = vpop.permute.xlu0 %116
    %120 = vset.pattern.permute.xlu0 0
    %121 = vperm.xlu0 %120, %v50
    %v122 = vpop.permute.xlu0 %121
    %125 = vset.pattern.permute.xlu0 0
    %126 = vperm.xlu0 %125, %v51
    %v127 = vpop.permute.xlu0 %126
    %130 = vset.pattern.permute.xlu0 0
    %131 = vperm.xlu0 %130, %v52
    %v132 = vpop.permute.xlu0 %131
    %135 = vset.pattern.permute.xlu0 0
    %136 = vperm.xlu0 %135, %v53
    %v137 = vpop.permute.xlu0 %136
    %140 = vset.pattern.permute.xlu0 0
    %141 = vperm.xlu0 %140, %v54
    %v142 = vpop.permute.xlu0 %141
    %145 = vset.pattern.permute.xlu0 0
    %146 = vperm.xlu0 %145, %v55
    %v147 = vpop.permute.xlu0 %146
    %150 = vset.pattern.permute.xlu0 0
    %151 = vperm.xlu0 %150, %v56
    %v152 = vpop.permute.xlu0 %151
    %155 = vset.pattern.permute.xlu0 0
    %156 = vperm.xlu0 %155, %v57
    %v157 = vpop.permute.xlu0 %156
    %160 = vset.pattern.permute.xlu0 0
    %161 = vperm.xlu0 %160, %v58
    %v162 = vpop.permute.xlu0 %161
    %165 = vset.pattern.permute.xlu0 0
    %166 = vperm.xlu0 %165, %v59
    %v167 = vpop.permute.xlu0 %166
    %170 = vset.pattern.permute.xlu0 0
    %171 = vperm.xlu0 %170, %v60
    %v172 = vpop.permute.xlu0 %171
    %175 = vset.pattern.permute.xlu0 0
    %176 = vperm.xlu0 %175, %v61
    %v177 = vpop.permute.xlu0 %176
    %180 = vset.pattern.permute.xlu0 0
    %181 = vperm.xlu0 %180, %v62
    %v182 = vpop.permute.xlu0 %181
    %185 = vset.pattern.permute.xlu0 0
    %186 = vperm.xlu0 %185, %v63
    %v187 = vpop.permute.xlu0 %186
    %190 = vset.pattern.permute.xlu0 0
    %191 = vperm.xlu0 %190, %v64
    %v192 = vpop.permute.xlu0 %191
    %195 = vset.pattern.permute.xlu0 0
    %196 = vperm.xlu0 %195, %v65
    %v197 = vpop.permute.xlu0 %196
    %200 = vset.pattern.permute.xlu0 0
    %201 = vperm.xlu0 %200, %v66
    %v202 = vpop.permute.xlu0 %201
    %205 = vset.pattern.permute.xlu0 0
    %206 = vperm.xlu0 %205, %v67
    %v207 = vpop.permute.xlu0 %206
    %210 = vset.pattern.permute.xlu0 0
    %211 = vperm.xlu0 %210, %v68
    %v212 = vpop.permute.xlu0 %211
    %215 = vset.pattern.permute.xlu0 0
    %216 = vperm.xlu0 %215, %v69
    %v217 = vpop.permute.xlu0 %216
    %220 = vset.pattern.permute.xlu0 0
    %221 = vperm.xlu0 %220, %v70
    %v222 = vpop.permute.xlu0 %221
    %225 = vset.pattern.permute.xlu0 0
    %226 = vperm.xlu0 %225, %v71
    %v227 = vpop.permute.xlu0 %226
    %230 = vset.pattern.permute.xlu0 0
    %231 = vperm.xlu0 %230, %v72
    %v232 = vpop.permute.xlu0 %231
    %v235 = vlaneseq
    %v236 = vshrl.u32 %v235, 7
    %v237 = vsub.s32 0, %v236
    %v238 = vrot.slane %v73, %v237
    %v239 = vlaneseq
    %v240 = vshrl.u32 %v239, 7
    %v241 = vsub.s32 4, %v240
    %v242 = vrot.slane %v73, %v241
    %v245 = vlaneseq
    %v246 = vshrl.u32 %v245, 7
    %v247 = vsub.s32 0, %v246
    %v248 = vrot.slane %v238, %v247
    %v249 = vlaneseq
    %v250 = vshrl.u32 %v249, 7
    %v251 = vsub.s32 0, %v250
    %v252 = vrot.slane %v242, %v251
    %v253 = vmul.f32 %v77, %v248
    %v254 = vmul.f32 %v77, %v252
    %v255 = vmul.f32 %v82, %v248
    %v256 = vmul.f32 %v82, %v252
    %v257 = vmul.f32 %v87, %v248
    %v258 = vmul.f32 %v87, %v252
    %v259 = vmul.f32 %v92, %v248
    %v260 = vmul.f32 %v92, %v252
    %v261 = vmul.f32 %v97, %v248
    %v262 = vmul.f32 %v97, %v252
    %v263 = vmul.f32 %v102, %v248
    %v264 = vmul.f32 %v102, %v252
    %v265 = vmul.f32 %v107, %v248
    %v266 = vmul.f32 %v107, %v252
    %v267 = vmul.f32 %v112, %v248
    %v268 = vmul.f32 %v112, %v252
    %v269 = vmul.f32 %v117, %v248
    %v270 = vmul.f32 %v117, %v252
    %v271 = vmul.f32 %v122, %v248
    %v272 = vmul.f32 %v122, %v252
    %v273 = vmul.f32 %v127, %v248
    %v274 = vmul.f32 %v127, %v252
    %v275 = vmul.f32 %v132, %v248
    %v276 = vmul.f32 %v132, %v252
    %v277 = vmul.f32 %v137, %v248
    %v278 = vmul.f32 %v137, %v252
    %v279 = vmul.f32 %v142, %v248
    %v280 = vmul.f32 %v142, %v252
    %v281 = vmul.f32 %v147, %v248
    %v282 = vmul.f32 %v147, %v252
    %v283 = vmul.f32 %v152, %v248
    %v284 = vmul.f32 %v152, %v252
    %v285 = vmul.f32 %v157, %v248
    %v286 = vmul.f32 %v157, %v252
    %v287 = vmul.f32 %v162, %v248
    %v288 = vmul.f32 %v162, %v252
    %v289 = vmul.f32 %v167, %v248
    %v290 = vmul.f32 %v167, %v252
    %v291 = vmul.f32 %v172, %v248
    %v292 = vmul.f32 %v172, %v252
    %v293 = vmul.f32 %v177, %v248
    %v294 = vmul.f32 %v177, %v252
    %v295 = vmul.f32 %v182, %v248
    %v296 = vmul.f32 %v182, %v252
    %v297 = vmul.f32 %v187, %v248
    %v298 = vmul.f32 %v187, %v252
    %v299 = vmul.f32 %v192, %v248
    %v300 = vmul.f32 %v192, %v252
    %v301 = vmul.f32 %v197, %v248
    %v302 = vmul.f32 %v197, %v252
    %v303 = vmul.f32 %v202, %v248
    %v304 = vmul.f32 %v202, %v252
    %v305 = vmul.f32 %v207, %v248
    %v306 = vmul.f32 %v207, %v252
    %v307 = vmul.f32 %v212, %v248
    %v308 = vmul.f32 %v212, %v252
    %v309 = vmul.f32 %v217, %v248
    %v310 = vmul.f32 %v217, %v252
    %v311 = vmul.f32 %v222, %v248
    %v312 = vmul.f32 %v222, %v252
    %v313 = vmul.f32 %v227, %v248
    %v314 = vmul.f32 %v227, %v252
    %v315 = vmul.f32 %v232, %v248
    %v316 = vmul.f32 %v232, %v252
    %317 = vset.pattern.permute.xlu0 1
    %318 = vperm.xlu0 %317, %v41
    %v319 = vpop.permute.xlu0 %318
    %321 = vset.pattern.permute.xlu0 1
    %322 = vperm.xlu0 %321, %v42
    %v323 = vpop.permute.xlu0 %322
    %325 = vset.pattern.permute.xlu0 1
    %326 = vperm.xlu0 %325, %v43
    %v327 = vpop.permute.xlu0 %326
    %329 = vset.pattern.permute.xlu0 1
    %330 = vperm.xlu0 %329, %v44
    %v331 = vpop.permute.xlu0 %330
    %333 = vset.pattern.permute.xlu0 1
    %334 = vperm.xlu0 %333, %v45
    %v335 = vpop.permute.xlu0 %334
    %337 = vset.pattern.permute.xlu0 1
    %338 = vperm.xlu0 %337, %v46
    %v339 = vpop.permute.xlu0 %338
    %341 = vset.pattern.permute.xlu0 1
    %342 = vperm.xlu0 %341, %v47
    %v343 = vpop.permute.xlu0 %342
    %345 = vset.pattern.permute.xlu0 1
    %346 = vperm.xlu0 %345, %v48
    %v347 = vpop.permute.xlu0 %346
    %349 = vset.pattern.permute.xlu0 1
    %350 = vperm.xlu0 %349, %v49
    %v351 = vpop.permute.xlu0 %350
    %353 = vset.pattern.permute.xlu0 1
    %354 = vperm.xlu0 %353, %v50
    %v355 = vpop.permute.xlu0 %354
    %357 = vset.pattern.permute.xlu0 1
    %358 = vperm.xlu0 %357, %v51
    %v359 = vpop.permute.xlu0 %358
    %361 = vset.pattern.permute.xlu0 1
    %362 = vperm.xlu0 %361, %v52
    %v363 = vpop.permute.xlu0 %362
    %365 = vset.pattern.permute.xlu0 1
    %366 = vperm.xlu0 %365, %v53
    %v367 = vpop.permute.xlu0 %366
    %369 = vset.pattern.permute.xlu0 1
    %370 = vperm.xlu0 %369, %v54
    %v371 = vpop.permute.xlu0 %370
    %373 = vset.pattern.permute.xlu0 1
    %374 = vperm.xlu0 %373, %v55
    %v375 = vpop.permute.xlu0 %374
    %377 = vset.pattern.permute.xlu0 1
    %378 = vperm.xlu0 %377, %v56
    %v379 = vpop.permute.xlu0 %378
    %381 = vset.pattern.permute.xlu0 1
    %382 = vperm.xlu0 %381, %v57
    %v383 = vpop.permute.xlu0 %382
    %385 = vset.pattern.permute.xlu0 1
    %386 = vperm.xlu0 %385, %v58
    %v387 = vpop.permute.xlu0 %386
    %389 = vset.pattern.permute.xlu0 1
    %390 = vperm.xlu0 %389, %v59
    %v391 = vpop.permute.xlu0 %390
    %393 = vset.pattern.permute.xlu0 1
    %394 = vperm.xlu0 %393, %v60
    %v395 = vpop.permute.xlu0 %394
    %397 = vset.pattern.permute.xlu0 1
    %398 = vperm.xlu0 %397, %v61
    %v399 = vpop.permute.xlu0 %398
    %401 = vset.pattern.permute.xlu0 1
    %402 = vperm.xlu0 %401, %v62
    %v403 = vpop.permute.xlu0 %402
    %405 = vset.pattern.permute.xlu0 1
    %406 = vperm.xlu0 %405, %v63
    %v407 = vpop.permute.xlu0 %406
    %409 = vset.pattern.permute.xlu0 1
    %410 = vperm.xlu0 %409, %v64
    %v411 = vpop.permute.xlu0 %410
    %413 = vset.pattern.permute.xlu0 1
    %414 = vperm.xlu0 %413, %v65
    %v415 = vpop.permute.xlu0 %414
    %417 = vset.pattern.permute.xlu0 1
    %418 = vperm.xlu0 %417, %v66
    %v419 = vpop.permute.xlu0 %418
    %421 = vset.pattern.permute.xlu0 1
    %422 = vperm.xlu0 %421, %v67
    %v423 = vpop.permute.xlu0 %422
    %425 = vset.pattern.permute.xlu0 1
    %426 = vperm.xlu0 %425, %v68
    %v427 = vpop.permute.xlu0 %426
    %429 = vset.pattern.permute.xlu0 1
    %430 = vperm.xlu0 %429, %v69
    %v431 = vpop.permute.xlu0 %430
    %433 = vset.pattern.permute.xlu0 1
    %434 = vperm.xlu0 %433, %v70
    %v435 = vpop.permute.xlu0 %434
    %437 = vset.pattern.permute.xlu0 1
    %438 = vperm.xlu0 %437, %v71
    %v439 = vpop.permute.xlu0 %438
    %441 = vset.pattern.permute.xlu0 1
    %442 = vperm.xlu0 %441, %v72
    %v443 = vpop.permute.xlu0 %442
    %v445 = vlaneseq
    %v446 = vshrl.u32 %v445, 7
    %v447 = vsub.s32 1, %v446
    %v448 = vrot.slane %v73, %v447
    %v449 = vlaneseq
    %v450 = vshrl.u32 %v449, 7
    %v451 = vsub.s32 5, %v450
    %v452 = vrot.slane %v73, %v451
    %v455 = vlaneseq
    %v456 = vshrl.u32 %v455, 7
    %v457 = vsub.s32 1, %v456
    %v458 = vrot.slane %v448, %v457
    %v459 = vlaneseq
    %v460 = vshrl.u32 %v459, 7
    %v461 = vsub.s32 1, %v460
    %v462 = vrot.slane %v452, %v461
    %v463 = vmul.f32 %v319, %v458
    %v464 = vmul.f32 %v319, %v462
    %v465 = vmul.f32 %v323, %v458
    %v466 = vmul.f32 %v323, %v462
    %v467 = vmul.f32 %v327, %v458
    %v468 = vmul.f32 %v327, %v462
    %v469 = vmul.f32 %v331, %v458
    %v470 = vmul.f32 %v331, %v462
    %v471 = vmul.f32 %v335, %v458
    %v472 = vmul.f32 %v335, %v462
    %v473 = vmul.f32 %v339, %v458
    %v474 = vmul.f32 %v339, %v462
    %v475 = vmul.f32 %v343, %v458
    %v476 = vmul.f32 %v343, %v462
    %v477 = vmul.f32 %v347, %v458
    %v478 = vmul.f32 %v347, %v462
    %v479 = vmul.f32 %v351, %v458
    %v480 = vmul.f32 %v351, %v462
    %v481 = vmul.f32 %v355, %v458
    %v482 = vmul.f32 %v355, %v462
    %v483 = vmul.f32 %v359, %v458
    %v484 = vmul.f32 %v359, %v462
    %v485 = vmul.f32 %v363, %v458
    %v486 = vmul.f32 %v363, %v462
    %v487 = vmul.f32 %v367, %v458
    %v488 = vmul.f32 %v367, %v462
    %v489 = vmul.f32 %v371, %v458
    %v490 = vmul.f32 %v371, %v462
    %v491 = vmul.f32 %v375, %v458
    %v492 = vmul.f32 %v375, %v462
    %v493 = vmul.f32 %v379, %v458
    %v494 = vmul.f32 %v379, %v462
    %v495 = vmul.f32 %v383, %v458
    %v496 = vmul.f32 %v383, %v462
    %v497 = vmul.f32 %v387, %v458
    %v498 = vmul.f32 %v387, %v462
    %v499 = vmul.f32 %v391, %v458
    %v500 = vmul.f32 %v391, %v462
    %v501 = vmul.f32 %v395, %v458
    %v502 = vmul.f32 %v395, %v462
    %v503 = vmul.f32 %v399, %v458
    %v504 = vmul.f32 %v399, %v462
    %v505 = vmul.f32 %v403, %v458
    %v506 = vmul.f32 %v403, %v462
    %v507 = vmul.f32 %v407, %v458
    %v508 = vmul.f32 %v407, %v462
    %v509 = vmul.f32 %v411, %v458
    %v510 = vmul.f32 %v411, %v462
    %v511 = vmul.f32 %v415, %v458
    %v512 = vmul.f32 %v415, %v462
    %v513 = vmul.f32 %v419, %v458
    %v514 = vmul.f32 %v419, %v462
    %v515 = vmul.f32 %v423, %v458
    %v516 = vmul.f32 %v423, %v462
    %v517 = vmul.f32 %v427, %v458
    %v518 = vmul.f32 %v427, %v462
    %v519 = vmul.f32 %v431, %v458
    %v520 = vmul.f32 %v431, %v462
    %v521 = vmul.f32 %v435, %v458
    %v522 = vmul.f32 %v435, %v462
    %v523 = vmul.f32 %v439, %v458
    %v524 = vmul.f32 %v439, %v462
    %v525 = vmul.f32 %v443, %v458
    %v526 = vmul.f32 %v443, %v462
    %v527 = vadd.f32 %v253, %v463
    %v528 = vadd.f32 %v254, %v464
    %v529 = vadd.f32 %v255, %v465
    %v530 = vadd.f32 %v256, %v466
    %v531 = vadd.f32 %v257, %v467
    %v532 = vadd.f32 %v258, %v468
    %v533 = vadd.f32 %v259, %v469
    %v534 = vadd.f32 %v260, %v470
    %v535 = vadd.f32 %v261, %v471
    %v536 = vadd.f32 %v262, %v472
    %v537 = vadd.f32 %v263, %v473
    %v538 = vadd.f32 %v264, %v474
    %v539 = vadd.f32 %v265, %v475
    %v540 = vadd.f32 %v266, %v476
    %v541 = vadd.f32 %v267, %v477
    %v542 = vadd.f32 %v268, %v478
    %v543 = vadd.f32 %v269, %v479
    %v544 = vadd.f32 %v270, %v480
    %v545 = vadd.f32 %v271, %v481
    %v546 = vadd.f32 %v272, %v482
    %v547 = vadd.f32 %v273, %v483
    %v548 = vadd.f32 %v274, %v484
    %v549 = vadd.f32 %v275, %v485
    %v550 = vadd.f32 %v276, %v486
    %v551 = vadd.f32 %v277, %v487
    %v552 = vadd.f32 %v278, %v488
    %v553 = vadd.f32 %v279, %v489
    %v554 = vadd.f32 %v280, %v490
    %v555 = vadd.f32 %v281, %v491
    %v556 = vadd.f32 %v282, %v492
    %v557 = vadd.f32 %v283, %v493
    %v558 = vadd.f32 %v284, %v494
    %v559 = vadd.f32 %v285, %v495
    %v560 = vadd.f32 %v286, %v496
    %v561 = vadd.f32 %v287, %v497
    %v562 = vadd.f32 %v288, %v498
    %v563 = vadd.f32 %v289, %v499
    %v564 = vadd.f32 %v290, %v500
    %v565 = vadd.f32 %v291, %v501
    %v566 = vadd.f32 %v292, %v502
    %v567 = vadd.f32 %v293, %v503
    %v568 = vadd.f32 %v294, %v504
    %v569 = vadd.f32 %v295, %v505
    %v570 = vadd.f32 %v296, %v506
    %v571 = vadd.f32 %v297, %v507
    %v572 = vadd.f32 %v298, %v508
    %v573 = vadd.f32 %v299, %v509
    %v574 = vadd.f32 %v300, %v510
    %v575 = vadd.f32 %v301, %v511
    %v576 = vadd.f32 %v302, %v512
    %v577 = vadd.f32 %v303, %v513
    %v578 = vadd.f32 %v304, %v514
    %v579 = vadd.f32 %v305, %v515
    %v580 = vadd.f32 %v306, %v516
    %v581 = vadd.f32 %v307, %v517
    %v582 = vadd.f32 %v308, %v518
    %v583 = vadd.f32 %v309, %v519
    %v584 = vadd.f32 %v310, %v520
    %v585 = vadd.f32 %v311, %v521
    %v586 = vadd.f32 %v312, %v522
    %v587 = vadd.f32 %v313, %v523
    %v588 = vadd.f32 %v314, %v524
    %v589 = vadd.f32 %v315, %v525
    %v590 = vadd.f32 %v316, %v526
    %591 = vset.pattern.permute.xlu0 2
    %592 = vperm.xlu0 %591, %v41
    %v593 = vpop.permute.xlu0 %592
    %595 = vset.pattern.permute.xlu0 2
    %596 = vperm.xlu0 %595, %v42
    %v597 = vpop.permute.xlu0 %596
    %599 = vset.pattern.permute.xlu0 2
    %600 = vperm.xlu0 %599, %v43
    %v601 = vpop.permute.xlu0 %600
    %603 = vset.pattern.permute.xlu0 2
    %604 = vperm.xlu0 %603, %v44
    %v605 = vpop.permute.xlu0 %604
    %607 = vset.pattern.permute.xlu0 2
    %608 = vperm.xlu0 %607, %v45
    %v609 = vpop.permute.xlu0 %608
    %611 = vset.pattern.permute.xlu0 2
    %612 = vperm.xlu0 %611, %v46
    %v613 = vpop.permute.xlu0 %612
    %615 = vset.pattern.permute.xlu0 2
    %616 = vperm.xlu0 %615, %v47
    %v617 = vpop.permute.xlu0 %616
    %619 = vset.pattern.permute.xlu0 2
    %620 = vperm.xlu0 %619, %v48
    %v621 = vpop.permute.xlu0 %620
    %623 = vset.pattern.permute.xlu0 2
    %624 = vperm.xlu0 %623, %v49
    %v625 = vpop.permute.xlu0 %624
    %627 = vset.pattern.permute.xlu0 2
    %628 = vperm.xlu0 %627, %v50
    %v629 = vpop.permute.xlu0 %628
    %631 = vset.pattern.permute.xlu0 2
    %632 = vperm.xlu0 %631, %v51
    %v633 = vpop.permute.xlu0 %632
    %635 = vset.pattern.permute.xlu0 2
    %636 = vperm.xlu0 %635, %v52
    %v637 = vpop.permute.xlu0 %636
    %639 = vset.pattern.permute.xlu0 2
    %640 = vperm.xlu0 %639, %v53
    %v641 = vpop.permute.xlu0 %640
    %643 = vset.pattern.permute.xlu0 2
    %644 = vperm.xlu0 %643, %v54
    %v645 = vpop.permute.xlu0 %644
    %647 = vset.pattern.permute.xlu0 2
    %648 = vperm.xlu0 %647, %v55
    %v649 = vpop.permute.xlu0 %648
    %651 = vset.pattern.permute.xlu0 2
    %652 = vperm.xlu0 %651, %v56
    %v653 = vpop.permute.xlu0 %652
    %655 = vset.pattern.permute.xlu0 2
    %656 = vperm.xlu0 %655, %v57
    %v657 = vpop.permute.xlu0 %656
    %659 = vset.pattern.permute.xlu0 2
    %660 = vperm.xlu0 %659, %v58
    %v661 = vpop.permute.xlu0 %660
    %663 = vset.pattern.permute.xlu0 2
    %664 = vperm.xlu0 %663, %v59
    %v665 = vpop.permute.xlu0 %664
    %667 = vset.pattern.permute.xlu0 2
    %668 = vperm.xlu0 %667, %v60
    %v669 = vpop.permute.xlu0 %668
    %671 = vset.pattern.permute.xlu0 2
    %672 = vperm.xlu0 %671, %v61
    %v673 = vpop.permute.xlu0 %672
    %675 = vset.pattern.permute.xlu0 2
    %676 = vperm.xlu0 %675, %v62
    %v677 = vpop.permute.xlu0 %676
    %679 = vset.pattern.permute.xlu0 2
    %680 = vperm.xlu0 %679, %v63
    %v681 = vpop.permute.xlu0 %680
    %683 = vset.pattern.permute.xlu0 2
    %684 = vperm.xlu0 %683, %v64
    %v685 = vpop.permute.xlu0 %684
    %687 = vset.pattern.permute.xlu0 2
    %688 = vperm.xlu0 %687, %v65
    %v689 = vpop.permute.xlu0 %688
    %691 = vset.pattern.permute.xlu0 2
    %692 = vperm.xlu0 %691, %v66
    %v693 = vpop.permute.xlu0 %692
    %695 = vset.pattern.permute.xlu0 2
    %696 = vperm.xlu0 %695, %v67
    %v697 = vpop.permute.xlu0 %696
    %699 = vset.pattern.permute.xlu0 2
    %700 = vperm.xlu0 %699, %v68
    %v701 = vpop.permute.xlu0 %700
    %703 = vset.pattern.permute.xlu0 2
    %704 = vperm.xlu0 %703, %v69
    %v705 = vpop.permute.xlu0 %704
    %707 = vset.pattern.permute.xlu0 2
    %708 = vperm.xlu0 %707, %v70
    %v709 = vpop.permute.xlu0 %708
    %711 = vset.pattern.permute.xlu0 2
    %712 = vperm.xlu0 %711, %v71
    %v713 = vpop.permute.xlu0 %712
    %715 = vset.pattern.permute.xlu0 2
    %716 = vperm.xlu0 %715, %v72
    %v717 = vpop.permute.xlu0 %716
    %v719 = vlaneseq
    %v720 = vshrl.u32 %v719, 7
    %v721 = vsub.s32 2, %v720
    %v722 = vrot.slane %v73, %v721
    %v723 = vlaneseq
    %v724 = vshrl.u32 %v723, 7
    %v725 = vsub.s32 6, %v724
    %v726 = vrot.slane %v73, %v725
    %v729 = vlaneseq
    %v730 = vshrl.u32 %v729, 7
    %v731 = vsub.s32 2, %v730
    %v732 = vrot.slane %v722, %v731
    %v733 = vlaneseq
    %v734 = vshrl.u32 %v733, 7
    %v735 = vsub.s32 2, %v734
    %v736 = vrot.slane %v726, %v735
    %v737 = vmul.f32 %v593, %v732
    %v738 = vmul.f32 %v593, %v736
    %v739 = vmul.f32 %v597, %v732
    %v740 = vmul.f32 %v597, %v736
    %v741 = vmul.f32 %v601, %v732
    %v742 = vmul.f32 %v601, %v736
    %v743 = vmul.f32 %v605, %v732
    %v744 = vmul.f32 %v605, %v736
    %v745 = vmul.f32 %v609, %v732
    %v746 = vmul.f32 %v609, %v736
    %v747 = vmul.f32 %v613, %v732
    %v748 = vmul.f32 %v613, %v736
    %v749 = vmul.f32 %v617, %v732
    %v750 = vmul.f32 %v617, %v736
    %v751 = vmul.f32 %v621, %v732
    %v752 = vmul.f32 %v621, %v736
    %v753 = vmul.f32 %v625, %v732
    %v754 = vmul.f32 %v625, %v736
    %v755 = vmul.f32 %v629, %v732
    %v756 = vmul.f32 %v629, %v736
    %v757 = vmul.f32 %v633, %v732
    %v758 = vmul.f32 %v633, %v736
    %v759 = vmul.f32 %v637, %v732
    %v760 = vmul.f32 %v637, %v736
    %v761 = vmul.f32 %v641, %v732
    %v762 = vmul.f32 %v641, %v736
    %v763 = vmul.f32 %v645, %v732
    %v764 = vmul.f32 %v645, %v736
    %v765 = vmul.f32 %v649, %v732
    %v766 = vmul.f32 %v649, %v736
    %v767 = vmul.f32 %v653, %v732
    %v768 = vmul.f32 %v653, %v736
    %v769 = vmul.f32 %v657, %v732
    %v770 = vmul.f32 %v657, %v736
    %v771 = vmul.f32 %v661, %v732
    %v772 = vmul.f32 %v661, %v736
    %v773 = vmul.f32 %v665, %v732
    %v774 = vmul.f32 %v665, %v736
    %v775 = vmul.f32 %v669, %v732
    %v776 = vmul.f32 %v669, %v736
    %v777 = vmul.f32 %v673, %v732
    %v778 = vmul.f32 %v673, %v736
    %v779 = vmul.f32 %v677, %v732
    %v780 = vmul.f32 %v677, %v736
    %v781 = vmul.f32 %v681, %v732
    %v782 = vmul.f32 %v681, %v736
    %v783 = vmul.f32 %v685, %v732
    %v784 = vmul.f32 %v685, %v736
    %v785 = vmul.f32 %v689, %v732
    %v786 = vmul.f32 %v689, %v736
    %v787 = vmul.f32 %v693, %v732
    %v788 = vmul.f32 %v693, %v736
    %v789 = vmul.f32 %v697, %v732
    %v790 = vmul.f32 %v697, %v736
    %v791 = vmul.f32 %v701, %v732
    %v792 = vmul.f32 %v701, %v736
    %v793 = vmul.f32 %v705, %v732
    %v794 = vmul.f32 %v705, %v736
    %v795 = vmul.f32 %v709, %v732
    %v796 = vmul.f32 %v709, %v736
    %v797 = vmul.f32 %v713, %v732
    %v798 = vmul.f32 %v713, %v736
    %v799 = vmul.f32 %v717, %v732
    %v800 = vmul.f32 %v717, %v736
    %v801 = vadd.f32 %v527, %v737
    %v802 = vadd.f32 %v528, %v738
    %v803 = vadd.f32 %v529, %v739
    %v804 = vadd.f32 %v530, %v740
    %v805 = vadd.f32 %v531, %v741
    %v806 = vadd.f32 %v532, %v742
    %v807 = vadd.f32 %v533, %v743
    %v808 = vadd.f32 %v534, %v744
    %v809 = vadd.f32 %v535, %v745
    %v810 = vadd.f32 %v536, %v746
    %v811 = vadd.f32 %v537, %v747
    %v812 = vadd.f32 %v538, %v748
    %v813 = vadd.f32 %v539, %v749
    %v814 = vadd.f32 %v540, %v750
    %v815 = vadd.f32 %v541, %v751
    %v816 = vadd.f32 %v542, %v752
    %v817 = vadd.f32 %v543, %v753
    %v818 = vadd.f32 %v544, %v754
    %v819 = vadd.f32 %v545, %v755
    %v820 = vadd.f32 %v546, %v756
    %v821 = vadd.f32 %v547, %v757
    %v822 = vadd.f32 %v548, %v758
    %v823 = vadd.f32 %v549, %v759
    %v824 = vadd.f32 %v550, %v760
    %v825 = vadd.f32 %v551, %v761
    %v826 = vadd.f32 %v552, %v762
    %v827 = vadd.f32 %v553, %v763
    %v828 = vadd.f32 %v554, %v764
    %v829 = vadd.f32 %v555, %v765
    %v830 = vadd.f32 %v556, %v766
    %v831 = vadd.f32 %v557, %v767
    %v832 = vadd.f32 %v558, %v768
    %v833 = vadd.f32 %v559, %v769
    %v834 = vadd.f32 %v560, %v770
    %v835 = vadd.f32 %v561, %v771
    %v836 = vadd.f32 %v562, %v772
    %v837 = vadd.f32 %v563, %v773
    %v838 = vadd.f32 %v564, %v774
    %v839 = vadd.f32 %v565, %v775
    %v840 = vadd.f32 %v566, %v776
    %v841 = vadd.f32 %v567, %v777
    %v842 = vadd.f32 %v568, %v778
    %v843 = vadd.f32 %v569, %v779
    %v844 = vadd.f32 %v570, %v780
    %v845 = vadd.f32 %v571, %v781
    %v846 = vadd.f32 %v572, %v782
    %v847 = vadd.f32 %v573, %v783
    %v848 = vadd.f32 %v574, %v784
    %v849 = vadd.f32 %v575, %v785
    %v850 = vadd.f32 %v576, %v786
    %v851 = vadd.f32 %v577, %v787
    %v852 = vadd.f32 %v578, %v788
    %v853 = vadd.f32 %v579, %v789
    %v854 = vadd.f32 %v580, %v790
    %v855 = vadd.f32 %v581, %v791
    %v856 = vadd.f32 %v582, %v792
    %v857 = vadd.f32 %v583, %v793
    %v858 = vadd.f32 %v584, %v794
    %v859 = vadd.f32 %v585, %v795
    %v860 = vadd.f32 %v586, %v796
    %v861 = vadd.f32 %v587, %v797
    %v862 = vadd.f32 %v588, %v798
    %v863 = vadd.f32 %v589, %v799
    %v864 = vadd.f32 %v590, %v800
    %865 = vset.pattern.permute.xlu0 3
    %866 = vperm.xlu0 %865, %v41
    %v867 = vpop.permute.xlu0 %866
    %869 = vset.pattern.permute.xlu0 3
    %870 = vperm.xlu0 %869, %v42
    %v871 = vpop.permute.xlu0 %870
    %873 = vset.pattern.permute.xlu0 3
    %874 = vperm.xlu0 %873, %v43
    %v875 = vpop.permute.xlu0 %874
    %877 = vset.pattern.permute.xlu0 3
    %878 = vperm.xlu0 %877, %v44
    %v879 = vpop.permute.xlu0 %878
    %881 = vset.pattern.permute.xlu0 3
    %882 = vperm.xlu0 %881, %v45
    %v883 = vpop.permute.xlu0 %882
    %885 = vset.pattern.permute.xlu0 3
    %886 = vperm.xlu0 %885, %v46
    %v887 = vpop.permute.xlu0 %886
    %889 = vset.pattern.permute.xlu0 3
    %890 = vperm.xlu0 %889, %v47
    %v891 = vpop.permute.xlu0 %890
    %893 = vset.pattern.permute.xlu0 3
    %894 = vperm.xlu0 %893, %v48
    %v895 = vpop.permute.xlu0 %894
    %897 = vset.pattern.permute.xlu0 3
    %898 = vperm.xlu0 %897, %v49
    %v899 = vpop.permute.xlu0 %898
    %901 = vset.pattern.permute.xlu0 3
    %902 = vperm.xlu0 %901, %v50
    %v903 = vpop.permute.xlu0 %902
    %905 = vset.pattern.permute.xlu0 3
    %906 = vperm.xlu0 %905, %v51
    %v907 = vpop.permute.xlu0 %906
    %909 = vset.pattern.permute.xlu0 3
    %910 = vperm.xlu0 %909, %v52
    %v911 = vpop.permute.xlu0 %910
    %913 = vset.pattern.permute.xlu0 3
    %914 = vperm.xlu0 %913, %v53
    %v915 = vpop.permute.xlu0 %914
    %917 = vset.pattern.permute.xlu0 3
    %918 = vperm.xlu0 %917, %v54
    %v919 = vpop.permute.xlu0 %918
    %921 = vset.pattern.permute.xlu0 3
    %922 = vperm.xlu0 %921, %v55
    %v923 = vpop.permute.xlu0 %922
    %925 = vset.pattern.permute.xlu0 3
    %926 = vperm.xlu0 %925, %v56
    %v927 = vpop.permute.xlu0 %926
    %929 = vset.pattern.permute.xlu0 3
    %930 = vperm.xlu0 %929, %v57
    %v931 = vpop.permute.xlu0 %930
    %933 = vset.pattern.permute.xlu0 3
    %934 = vperm.xlu0 %933, %v58
    %v935 = vpop.permute.xlu0 %934
    %937 = vset.pattern.permute.xlu0 3
    %938 = vperm.xlu0 %937, %v59
    %v939 = vpop.permute.xlu0 %938
    %941 = vset.pattern.permute.xlu0 3
    %942 = vperm.xlu0 %941, %v60
    %v943 = vpop.permute.xlu0 %942
    %945 = vset.pattern.permute.xlu0 3
    %946 = vperm.xlu0 %945, %v61
    %v947 = vpop.permute.xlu0 %946
    %949 = vset.pattern.permute.xlu0 3
    %950 = vperm.xlu0 %949, %v62
    %v951 = vpop.permute.xlu0 %950
    %953 = vset.pattern.permute.xlu0 3
    %954 = vperm.xlu0 %953, %v63
    %v955 = vpop.permute.xlu0 %954
    %957 = vset.pattern.permute.xlu0 3
    %958 = vperm.xlu0 %957, %v64
    %v959 = vpop.permute.xlu0 %958
    %961 = vset.pattern.permute.xlu0 3
    %962 = vperm.xlu0 %961, %v65
    %v963 = vpop.permute.xlu0 %962
    %965 = vset.pattern.permute.xlu0 3
    %966 = vperm.xlu0 %965, %v66
    %v967 = vpop.permute.xlu0 %966
    %969 = vset.pattern.permute.xlu0 3
    %970 = vperm.xlu0 %969, %v67
    %v971 = vpop.permute.xlu0 %970
    %973 = vset.pattern.permute.xlu0 3
    %974 = vperm.xlu0 %973, %v68
    %v975 = vpop.permute.xlu0 %974
    %977 = vset.pattern.permute.xlu0 3
    %978 = vperm.xlu0 %977, %v69
    %v979 = vpop.permute.xlu0 %978
    %981 = vset.pattern.permute.xlu0 3
    %982 = vperm.xlu0 %981, %v70
    %v983 = vpop.permute.xlu0 %982
    %985 = vset.pattern.permute.xlu0 3
    %986 = vperm.xlu0 %985, %v71
    %v987 = vpop.permute.xlu0 %986
    %989 = vset.pattern.permute.xlu0 3
    %990 = vperm.xlu0 %989, %v72
    %v991 = vpop.permute.xlu0 %990
    %v993 = vlaneseq
    %v994 = vshrl.u32 %v993, 7
    %v995 = vsub.s32 3, %v994
    %v996 = vrot.slane %v73, %v995
    %v997 = vlaneseq
    %v998 = vshrl.u32 %v997, 7
    %v999 = vsub.s32 7, %v998
    %v1000 = vrot.slane %v73, %v999
    %v1003 = vlaneseq
    %v1004 = vshrl.u32 %v1003, 7
    %v1005 = vsub.s32 3, %v1004
    %v1006 = vrot.slane %v996, %v1005
    %v1007 = vlaneseq
    %v1008 = vshrl.u32 %v1007, 7
    %v1009 = vsub.s32 3, %v1008
    %v1010 = vrot.slane %v1000, %v1009
    %v1011 = vmul.f32 %v867, %v1006
    %v1012 = vmul.f32 %v867, %v1010
    %v1013 = vmul.f32 %v871, %v1006
    %v1014 = vmul.f32 %v871, %v1010
    %v1015 = vmul.f32 %v875, %v1006
    %v1016 = vmul.f32 %v875, %v1010
    %v1017 = vmul.f32 %v879, %v1006
    %v1018 = vmul.f32 %v879, %v1010
    %v1019 = vmul.f32 %v883, %v1006
    %v1020 = vmul.f32 %v883, %v1010
    %v1021 = vmul.f32 %v887, %v1006
    %v1022 = vmul.f32 %v887, %v1010
    %v1023 = vmul.f32 %v891, %v1006
    %v1024 = vmul.f32 %v891, %v1010
    %v1025 = vmul.f32 %v895, %v1006
    %v1026 = vmul.f32 %v895, %v1010
    %v1027 = vmul.f32 %v899, %v1006
    %v1028 = vmul.f32 %v899, %v1010
    %v1029 = vmul.f32 %v903, %v1006
    %v1030 = vmul.f32 %v903, %v1010
    %v1031 = vmul.f32 %v907, %v1006
    %v1032 = vmul.f32 %v907, %v1010
    %v1033 = vmul.f32 %v911, %v1006
    %v1034 = vmul.f32 %v911, %v1010
    %v1035 = vmul.f32 %v915, %v1006
    %v1036 = vmul.f32 %v915, %v1010
    %v1037 = vmul.f32 %v919, %v1006
    %v1038 = vmul.f32 %v919, %v1010
    %v1039 = vmul.f32 %v923, %v1006
    %v1040 = vmul.f32 %v923, %v1010
    %v1041 = vmul.f32 %v927, %v1006
    %v1042 = vmul.f32 %v927, %v1010
    %v1043 = vmul.f32 %v931, %v1006
    %v1044 = vmul.f32 %v931, %v1010
    %v1045 = vmul.f32 %v935, %v1006
    %v1046 = vmul.f32 %v935, %v1010
    %v1047 = vmul.f32 %v939, %v1006
    %v1048 = vmul.f32 %v939, %v1010
    %v1049 = vmul.f32 %v943, %v1006
    %v1050 = vmul.f32 %v943, %v1010
    %v1051 = vmul.f32 %v947, %v1006
    %v1052 = vmul.f32 %v947, %v1010
    %v1053 = vmul.f32 %v951, %v1006
    %v1054 = vmul.f32 %v951, %v1010
    %v1055 = vmul.f32 %v955, %v1006
    %v1056 = vmul.f32 %v955, %v1010
    %v1057 = vmul.f32 %v959, %v1006
    %v1058 = vmul.f32 %v959, %v1010
    %v1059 = vmul.f32 %v963, %v1006
    %v1060 = vmul.f32 %v963, %v1010
    %v1061 = vmul.f32 %v967, %v1006
    %v1062 = vmul.f32 %v967, %v1010
    %v1063 = vmul.f32 %v971, %v1006
    %v1064 = vmul.f32 %v971, %v1010
    %v1065 = vmul.f32 %v975, %v1006
    %v1066 = vmul.f32 %v975, %v1010
    %v1067 = vmul.f32 %v979, %v1006
    %v1068 = vmul.f32 %v979, %v1010
    %v1069 = vmul.f32 %v983, %v1006
    %v1070 = vmul.f32 %v983, %v1010
    %v1071 = vmul.f32 %v987, %v1006
    %v1072 = vmul.f32 %v987, %v1010
    %v1073 = vmul.f32 %v991, %v1006
    %v1074 = vmul.f32 %v991, %v1010
    %v1075 = vadd.f32 %v801, %v1011
    %v1076 = vadd.f32 %v802, %v1012
    %v1077 = vadd.f32 %v803, %v1013
    %v1078 = vadd.f32 %v804, %v1014
    %v1079 = vadd.f32 %v805, %v1015
    %v1080 = vadd.f32 %v806, %v1016
    %v1081 = vadd.f32 %v807, %v1017
    %v1082 = vadd.f32 %v808, %v1018
    %v1083 = vadd.f32 %v809, %v1019
    %v1084 = vadd.f32 %v810, %v1020
    %v1085 = vadd.f32 %v811, %v1021
    %v1086 = vadd.f32 %v812, %v1022
    %v1087 = vadd.f32 %v813, %v1023
    %v1088 = vadd.f32 %v814, %v1024
    %v1089 = vadd.f32 %v815, %v1025
    %v1090 = vadd.f32 %v816, %v1026
    %v1091 = vadd.f32 %v817, %v1027
    %v1092 = vadd.f32 %v818, %v1028
    %v1093 = vadd.f32 %v819, %v1029
    %v1094 = vadd.f32 %v820, %v1030
    %v1095 = vadd.f32 %v821, %v1031
    %v1096 = vadd.f32 %v822, %v1032
    %v1097 = vadd.f32 %v823, %v1033
    %v1098 = vadd.f32 %v824, %v1034
    %v1099 = vadd.f32 %v825, %v1035
    %v1100 = vadd.f32 %v826, %v1036
    %v1101 = vadd.f32 %v827, %v1037
    %v1102 = vadd.f32 %v828, %v1038
    %v1103 = vadd.f32 %v829, %v1039
    %v1104 = vadd.f32 %v830, %v1040
    %v1105 = vadd.f32 %v831, %v1041
    %v1106 = vadd.f32 %v832, %v1042
    %v1107 = vadd.f32 %v833, %v1043
    %v1108 = vadd.f32 %v834, %v1044
    %v1109 = vadd.f32 %v835, %v1045
    %v1110 = vadd.f32 %v836, %v1046
    %v1111 = vadd.f32 %v837, %v1047
    %v1112 = vadd.f32 %v838, %v1048
    %v1113 = vadd.f32 %v839, %v1049
    %v1114 = vadd.f32 %v840, %v1050
    %v1115 = vadd.f32 %v841, %v1051
    %v1116 = vadd.f32 %v842, %v1052
    %v1117 = vadd.f32 %v843, %v1053
    %v1118 = vadd.f32 %v844, %v1054
    %v1119 = vadd.f32 %v845, %v1055
    %v1120 = vadd.f32 %v846, %v1056
    %v1121 = vadd.f32 %v847, %v1057
    %v1122 = vadd.f32 %v848, %v1058
    %v1123 = vadd.f32 %v849, %v1059
    %v1124 = vadd.f32 %v850, %v1060
    %v1125 = vadd.f32 %v851, %v1061
    %v1126 = vadd.f32 %v852, %v1062
    %v1127 = vadd.f32 %v853, %v1063
    %v1128 = vadd.f32 %v854, %v1064
    %v1129 = vadd.f32 %v855, %v1065
    %v1130 = vadd.f32 %v856, %v1066
    %v1131 = vadd.f32 %v857, %v1067
    %v1132 = vadd.f32 %v858, %v1068
    %v1133 = vadd.f32 %v859, %v1069
    %v1134 = vadd.f32 %v860, %v1070
    %v1135 = vadd.f32 %v861, %v1071
    %v1136 = vadd.f32 %v862, %v1072
    %v1137 = vadd.f32 %v863, %v1073
    %v1138 = vadd.f32 %v864, %v1074
    %v1139 = vld [vmem:[%s2] sm:$0x3]
    %v1141 = vlaneseq
    %v1142 = vshrl.u32 %v1141, 7
    %v1143 = vsub.s32 0, %v1142
    %v1144 = vrot.slane %v1139, %v1143
    %v1145 = vlaneseq
    %v1146 = vshrl.u32 %v1145, 7
    %v1147 = vsub.s32 1, %v1146
    %v1148 = vrot.slane %v1139, %v1147
    %v1151 = vadd.f32 %v1075, %v1144
    %v1152 = vadd.f32 %v1076, %v1148
    %v1153 = vadd.f32 %v1077, %v1144
    %v1154 = vadd.f32 %v1078, %v1148
    %v1155 = vadd.f32 %v1079, %v1144
    %v1156 = vadd.f32 %v1080, %v1148
    %v1157 = vadd.f32 %v1081, %v1144
    %v1158 = vadd.f32 %v1082, %v1148
    %v1159 = vadd.f32 %v1083, %v1144
    %v1160 = vadd.f32 %v1084, %v1148
    %v1161 = vadd.f32 %v1085, %v1144
    %v1162 = vadd.f32 %v1086, %v1148
    %v1163 = vadd.f32 %v1087, %v1144
    %v1164 = vadd.f32 %v1088, %v1148
    %v1165 = vadd.f32 %v1089, %v1144
    %v1166 = vadd.f32 %v1090, %v1148
    %v1167 = vadd.f32 %v1091, %v1144
    %v1168 = vadd.f32 %v1092, %v1148
    %v1169 = vadd.f32 %v1093, %v1144
    %v1170 = vadd.f32 %v1094, %v1148
    %v1171 = vadd.f32 %v1095, %v1144
    %v1172 = vadd.f32 %v1096, %v1148
    %v1173 = vadd.f32 %v1097, %v1144
    %v1174 = vadd.f32 %v1098, %v1148
    %v1175 = vadd.f32 %v1099, %v1144
    %v1176 = vadd.f32 %v1100, %v1148
    %v1177 = vadd.f32 %v1101, %v1144
    %v1178 = vadd.f32 %v1102, %v1148
    %v1179 = vadd.f32 %v1103, %v1144
    %v1180 = vadd.f32 %v1104, %v1148
    %v1181 = vadd.f32 %v1105, %v1144
    %v1182 = vadd.f32 %v1106, %v1148
    %v1183 = vadd.f32 %v1107, %v1144
    %v1184 = vadd.f32 %v1108, %v1148
    %v1185 = vadd.f32 %v1109, %v1144
    %v1186 = vadd.f32 %v1110, %v1148
    %v1187 = vadd.f32 %v1111, %v1144
    %v1188 = vadd.f32 %v1112, %v1148
    %v1189 = vadd.f32 %v1113, %v1144
    %v1190 = vadd.f32 %v1114, %v1148
    %v1191 = vadd.f32 %v1115, %v1144
    %v1192 = vadd.f32 %v1116, %v1148
    %v1193 = vadd.f32 %v1117, %v1144
    %v1194 = vadd.f32 %v1118, %v1148
    %v1195 = vadd.f32 %v1119, %v1144
    %v1196 = vadd.f32 %v1120, %v1148
    %v1197 = vadd.f32 %v1121, %v1144
    %v1198 = vadd.f32 %v1122, %v1148
    %v1199 = vadd.f32 %v1123, %v1144
    %v1200 = vadd.f32 %v1124, %v1148
    %v1201 = vadd.f32 %v1125, %v1144
    %v1202 = vadd.f32 %v1126, %v1148
    %v1203 = vadd.f32 %v1127, %v1144
    %v1204 = vadd.f32 %v1128, %v1148
    %v1205 = vadd.f32 %v1129, %v1144
    %v1206 = vadd.f32 %v1130, %v1148
    %v1207 = vadd.f32 %v1131, %v1144
    %v1208 = vadd.f32 %v1132, %v1148
    %v1209 = vadd.f32 %v1133, %v1144
    %v1210 = vadd.f32 %v1134, %v1148
    %v1211 = vadd.f32 %v1135, %v1144
    %v1212 = vadd.f32 %v1136, %v1148
    %v1213 = vadd.f32 %v1137, %v1144
    %v1214 = vadd.f32 %v1138, %v1148
    %v1215 = vmax.f32 %v1151, 0.0
    %v1216 = vmax.f32 %v1152, 0.0
    %v1217 = vmax.f32 %v1153, 0.0
    %v1218 = vmax.f32 %v1154, 0.0
    %v1219 = vmax.f32 %v1155, 0.0
    %v1220 = vmax.f32 %v1156, 0.0
    %v1221 = vmax.f32 %v1157, 0.0
    %v1222 = vmax.f32 %v1158, 0.0
    %v1223 = vmax.f32 %v1159, 0.0
    %v1224 = vmax.f32 %v1160, 0.0
    %v1225 = vmax.f32 %v1161, 0.0
    %v1226 = vmax.f32 %v1162, 0.0
    %v1227 = vmax.f32 %v1163, 0.0
    %v1228 = vmax.f32 %v1164, 0.0
    %v1229 = vmax.f32 %v1165, 0.0
    %v1230 = vmax.f32 %v1166, 0.0
    %v1231 = vmax.f32 %v1167, 0.0
    %v1232 = vmax.f32 %v1168, 0.0
    %v1233 = vmax.f32 %v1169, 0.0
    %v1234 = vmax.f32 %v1170, 0.0
    %v1235 = vmax.f32 %v1171, 0.0
    %v1236 = vmax.f32 %v1172, 0.0
    %v1237 = vmax.f32 %v1173, 0.0
    %v1238 = vmax.f32 %v1174, 0.0
    %v1239 = vmax.f32 %v1175, 0.0
    %v1240 = vmax.f32 %v1176, 0.0
    %v1241 = vmax.f32 %v1177, 0.0
    %v1242 = vmax.f32 %v1178, 0.0
    %v1243 = vmax.f32 %v1179, 0.0
    %v1244 = vmax.f32 %v1180, 0.0
    %v1245 = vmax.f32 %v1181, 0.0
    %v1246 = vmax.f32 %v1182, 0.0
    %v1247 = vmax.f32 %v1183, 0.0
    %v1248 = vmax.f32 %v1184, 0.0
    %v1249 = vmax.f32 %v1185, 0.0
    %v1250 = vmax.f32 %v1186, 0.0
    %v1251 = vmax.f32 %v1187, 0.0
    %v1252 = vmax.f32 %v1188, 0.0
    %v1253 = vmax.f32 %v1189, 0.0
    %v1254 = vmax.f32 %v1190, 0.0
    %v1255 = vmax.f32 %v1191, 0.0
    %v1256 = vmax.f32 %v1192, 0.0
    %v1257 = vmax.f32 %v1193, 0.0
    %v1258 = vmax.f32 %v1194, 0.0
    %v1259 = vmax.f32 %v1195, 0.0
    %v1260 = vmax.f32 %v1196, 0.0
    %v1261 = vmax.f32 %v1197, 0.0
    %v1262 = vmax.f32 %v1198, 0.0
    %v1263 = vmax.f32 %v1199, 0.0
    %v1264 = vmax.f32 %v1200, 0.0
    %v1265 = vmax.f32 %v1201, 0.0
    %v1266 = vmax.f32 %v1202, 0.0
    %v1267 = vmax.f32 %v1203, 0.0
    %v1268 = vmax.f32 %v1204, 0.0
    %v1269 = vmax.f32 %v1205, 0.0
    %v1270 = vmax.f32 %v1206, 0.0
    %v1271 = vmax.f32 %v1207, 0.0
    %v1272 = vmax.f32 %v1208, 0.0
    %v1273 = vmax.f32 %v1209, 0.0
    %v1274 = vmax.f32 %v1210, 0.0
    %v1275 = vmax.f32 %v1211, 0.0
    %v1276 = vmax.f32 %v1212, 0.0
    %v1277 = vmax.f32 %v1213, 0.0
    %v1278 = vmax.f32 %v1214, 0.0
    %v1279 = vld [vmem:[#allocation2] sm:$0xff]
    %v1280 = vld [vmem:[#allocation2 + $0x8] sm:$0xff]
    %v1281 = vld [vmem:[#allocation2 + $0x10] sm:$0xff]
    %v1282 = vld [vmem:[#allocation2 + $0x18] sm:$0xff]
    %v1283 = vld [vmem:[#allocation2 + $0x20] sm:$0xff]
    %v1284 = vld [vmem:[#allocation2 + $0x28] sm:$0xff]
    %v1285 = vld [vmem:[#allocation2 + $0x30] sm:$0xff]
    %v1286 = vld [vmem:[#allocation2 + $0x38] sm:$0xff]
    %v1287 = vld [vmem:[#allocation2 + $0x40] sm:$0xff]
    %v1288 = vld [vmem:[#allocation2 + $0x48] sm:$0xff]
    %v1289 = vld [vmem:[#allocation2 + $0x50] sm:$0xff]
    %v1290 = vld [vmem:[#allocation2 + $0x58] sm:$0xff]
    %v1291 = vld [vmem:[#allocation2 + $0x60] sm:$0xff]
    %v1292 = vld [vmem:[#allocation2 + $0x68] sm:$0xff]
    %v1293 = vld [vmem:[#allocation2 + $0x70] sm:$0xff]
    %v1294 = vld [vmem:[#allocation2 + $0x78] sm:$0xff]
    %v1295 = vld [vmem:[#allocation2 + $0x80] sm:$0xff]
    %v1296 = vld [vmem:[#allocation2 + $0x88] sm:$0xff]
    %v1297 = vld [vmem:[#allocation2 + $0x90] sm:$0xff]
    %v1298 = vld [vmem:[#allocation2 + $0x98] sm:$0xff]
    %v1299 = vld [vmem:[#allocation2 + $0xa0] sm:$0xff]
    %v1300 = vld [vmem:[#allocation2 + $0xa8] sm:$0xff]
    %v1301 = vld [vmem:[#allocation2 + $0xb0] sm:$0xff]
    %v1302 = vld [vmem:[#allocation2 + $0xb8] sm:$0xff]
    %v1303 = vld [vmem:[#allocation2 + $0xc0] sm:$0xff]
    %v1304 = vld [vmem:[#allocation2 + $0xc8] sm:$0xff]
    %v1305 = vld [vmem:[#allocation2 + $0xd0] sm:$0xff]
    %v1306 = vld [vmem:[#allocation2 + $0xd8] sm:$0xff]
    %v1307 = vld [vmem:[#allocation2 + $0xe0] sm:$0xff]
    %v1308 = vld [vmem:[#allocation2 + $0xe8] sm:$0xff]
    %v1309 = vld [vmem:[#allocation2 + $0xf0] sm:$0xff]
    %v1310 = vld [vmem:[#allocation2 + $0xf8] sm:$0xff]
    %v1311 = vld [vmem:[#allocation2 + $0x100] sm:$0xff]
    %v1312 = vld [vmem:[#allocation2 + $0x108] sm:$0xff]
    %v1313 = vld [vmem:[#allocation2 + $0x110] sm:$0xff]
    %v1314 = vld [vmem:[#allocation2 + $0x118] sm:$0xff]
    %v1315 = vld [vmem:[#allocation2 + $0x120] sm:$0xff]
    %v1316 = vld [vmem:[#allocation2 + $0x128] sm:$0xff]
    %v1317 = vld [vmem:[#allocation2 + $0x130] sm:$0xff]
    %v1318 = vld [vmem:[#allocation2 + $0x138] sm:$0xff]
    %v1319 = vld [vmem:[#allocation2 + $0x140] sm:$0xff]
    %v1320 = vld [vmem:[#allocation2 + $0x148] sm:$0xff]
    %v1321 = vld [vmem:[#allocation2 + $0x150] sm:$0xff]
    %v1322 = vld [vmem:[#allocation2 + $0x158] sm:$0xff]
    %v1323 = vld [vmem:[#allocation2 + $0x160] sm:$0xff]
    %v1324 = vld [vmem:[#allocation2 + $0x168] sm:$0xff]
    %v1325 = vld [vmem:[#allocation2 + $0x170] sm:$0xff]
    %v1326 = vld [vmem:[#allocation2 + $0x178] sm:$0xff]
    %v1327 = vld [vmem:[#allocation2 + $0x180] sm:$0xff]
    %v1328 = vld [vmem:[#allocation2 + $0x188] sm:$0xff]
    %v1329 = vld [vmem:[#allocation2 + $0x190] sm:$0xff]
    %v1330 = vld [vmem:[#allocation2 + $0x198] sm:$0xff]
    %v1331 = vld [vmem:[#allocation2 + $0x1a0] sm:$0xff]
    %v1332 = vld [vmem:[#allocation2 + $0x1a8] sm:$0xff]
    %v1333 = vld [vmem:[#allocation2 + $0x1b0] sm:$0xff]
    %v1334 = vld [vmem:[#allocation2 + $0x1b8] sm:$0xff]
    %v1335 = vld [vmem:[#allocation2 + $0x1c0] sm:$0xff]
    %v1336 = vld [vmem:[#allocation2 + $0x1c8] sm:$0xff]
    %v1337 = vld [vmem:[#allocation2 + $0x1d0] sm:$0xff]
    %v1338 = vld [vmem:[#allocation2 + $0x1d8] sm:$0xff]
    %v1339 = vld [vmem:[#allocation2 + $0x1e0] sm:$0xff]
    %v1340 = vld [vmem:[#allocation2 + $0x1e8] sm:$0xff]
    %v1341 = vld [vmem:[#allocation2 + $0x1f0] sm:$0xff]
    %v1342 = vld [vmem:[#allocation2 + $0x1f8] sm:$0xff]
    %v1343 = vld [vmem:[%s4] sm:$0x3]
    %v1345 = vlaneseq
    %v1346 = vshrl.u32 %v1345, 7
    %v1347 = vsub.s32 0, %v1346
    %v1348 = vrot.slane %v1343, %v1347
    %v1349 = vlaneseq
    %v1350 = vshrl.u32 %v1349, 7
    %v1351 = vsub.s32 1, %v1350
    %v1352 = vrot.slane %v1343, %v1351
    %1355 = vmatprep.subr.mxu0 %v1280
    %1356 = vmatpush1.msra.mxu0 %v1279
    %1357 = vmatprep.subr.mxu0 %v1282
    %1358 = vmatpush1.msra.mxu0 %v1281
    %1359 = vmatprep.subr.mxu0 %v1284
    %1360 = vmatpush1.msra.mxu0 %v1283
    %1361 = vmatprep.subr.mxu0 %v1286
    %1362 = vmatpush1.msra.mxu0 %v1285
    %1363 = vmatprep.subr.mxu0 %v1288
    %1364 = vmatpush1.msra.mxu0 %v1287
    %1365 = vmatprep.subr.mxu0 %v1290
    %1366 = vmatpush1.msra.mxu0 %v1289
    %1367 = vmatprep.subr.mxu0 %v1292
    %1368 = vmatpush1.msra.mxu0 %v1291
    %1369 = vmatprep.subr.mxu0 %v1294
    %1370 = vmatpush1.msra.mxu0 %v1293
    %1371 = vmatprep.subr.mxu0 %v1296
    %1372 = vmatpush1.msra.mxu0 %v1295
    %1373 = vmatprep.subr.mxu0 %v1298
    %1374 = vmatpush1.msra.mxu0 %v1297
    %1375 = vmatprep.subr.mxu0 %v1300
    %1376 = vmatpush1.msra.mxu0 %v1299
    %1377 = vmatprep.subr.mxu0 %v1302
    %1378 = vmatpush1.msra.mxu0 %v1301
    %1379 = vmatprep.subr.mxu0 %v1304
    %1380 = vmatpush1.msra.mxu0 %v1303
    %1381 = vmatprep.subr.mxu0 %v1306
    %1382 = vmatpush1.msra.mxu0 %v1305
    %1383 = vmatprep.subr.mxu0 %v1308
    %1384 = vmatpush1.msra.mxu0 %v1307
    %1385 = vmatprep.subr.mxu0 %v1310
    %1386 = vmatpush1.msra.mxu0 %v1309
    %1387 = vmatprep.subr.mxu0 %v1312
    %1388 = vmatpush1.msra.mxu0 %v1311
    %1389 = vmatprep.subr.mxu0 %v1314
    %1390 = vmatpush1.msra.mxu0 %v1313
    %1391 = vmatprep.subr.mxu0 %v1316
    %1392 = vmatpush1.msra.mxu0 %v1315
    %1393 = vmatprep.subr.mxu0 %v1318
    %1394 = vmatpush1.msra.mxu0 %v1317
    %1395 = vmatprep.subr.mxu0 %v1320
    %1396 = vmatpush1.msra.mxu0 %v1319
    %1397 = vmatprep.subr.mxu0 %v1322
    %1398 = vmatpush1.msra.mxu0 %v1321
    %1399 = vmatprep.subr.mxu0 %v1324
    %1400 = vmatpush1.msra.mxu0 %v1323
    %1401 = vmatprep.subr.mxu0 %v1326
    %1402 = vmatpush1.msra.mxu0 %v1325
    %1403 = vmatprep.subr.mxu0 %v1328
    %1404 = vmatpush1.msra.mxu0 %v1327
    %1405 = vmatprep.subr.mxu0 %v1330
    %1406 = vmatpush1.msra.mxu0 %v1329
    %1407 = vmatprep.subr.mxu0 %v1332
    %1408 = vmatpush1.msra.mxu0 %v1331
    %1409 = vmatprep.subr.mxu0 %v1334
    %1410 = vmatpush1.msra.mxu0 %v1333
    %1411 = vmatprep.subr.mxu0 %v1336
    %1412 = vmatpush1.msra.mxu0 %v1335
    %1413 = vmatprep.subr.mxu0 %v1338
    %1414 = vmatpush1.msra.mxu0 %v1337
    %1415 = vmatprep.subr.mxu0 %v1340
    %1416 = vmatpush1.msra.mxu0 %v1339
    %1417 = vmatprep.subr.mxu0 %v1342
    %1418 = vmatpush1.msra.mxu0 %v1341
    %1419 = vmatprep.mubr.f32.mxu0 %v1216
    %1420 = vmatmul.mubr.f32.gmra.mrb[0].mxu0 %v1215
    %v1421 = vpop.f32.mrb[0].mxu0
    %v1422 = vadd.f32 %v1348, %v1421
    %v1423 = vpop.f32.mrb[0].mxu0
    %v1424 = vadd.f32 %v1352, %v1423
    %1425 = vmatprep.mubr.f32.mxu0 %v1218
    %1426 = vmatmul.mubr.f32.gmra.mrb[0].mxu0 %v1217
    %v1427 = vpop.f32.mrb[0].mxu0
    %v1428 = vadd.f32 %v1348, %v1427
    %v1429 = vpop.f32.mrb[0].mxu0
    %v1430 = vadd.f32 %v1352, %v1429
    %1431 = vmatprep.mubr.f32.mxu0 %v1220
    %1432 = vmatmul.mubr.f32.gmra.mrb[0].mxu0 %v1219
    %v1433 = vpop.f32.mrb[0].mxu0
    %v1434 = vadd.f32 %v1348, %v1433
    %v1435 = vpop.f32.mrb[0].mxu0
    %v1436 = vadd.f32 %v1352, %v1435
    %1437 = vmatprep.mubr.f32.mxu0 %v1222
    %1438 = vmatmul.mubr.f32.gmra.mrb[0].mxu0 %v1221
    %v1439 = vpop.f32.mrb[0].mxu0
    %v1440 = vadd.f32 %v1348, %v1439
    %v1441 = vpop.f32.mrb[0].mxu0
    %v1442 = vadd.f32 %v1352, %v1441
    %1443 = vmatprep.mubr.f32.mxu0 %v1224
    %1444 = vmatmul.mubr.f32.gmra.mrb[0].mxu0 %v1223
    %v1445 = vpop.f32.mrb[0].mxu0
    %v1446 = vadd.f32 %v1348, %v1445
    %v1447 = vpop.f32.mrb[0].mxu0
    %v1448 = vadd.f32 %v1352, %v1447
    %1449 = vmatprep.mubr.f32.mxu0 %v1226
    %1450 = vmatmul.mubr.f32.gmra.mrb[0].mxu0 %v1225
    %v1451 = vpop.f32.mrb[0].mxu0
    %v1452 = vadd.f32 %v1348, %v1451
    %v1453 = vpop.f32.mrb[0].mxu0
    %v1454 = vadd.f32 %v1352, %v1453
    %1455 = vmatprep.mubr.f32.mxu0 %v1228
    %1456 = vmatmul.mubr.f32.gmra.mrb[0].mxu0 %v1227
    %v1457 = vpop.f32.mrb[0].mxu0
    %v1458 = vadd.f32 %v1348, %v1457
    %v1459 = vpop.f32.mrb[0].mxu0
    %v1460 = vadd.f32 %v1352, %v1459
    %1461 = vmatprep.mubr.f32.mxu0 %v1230
    %1462 = vmatmul.mubr.f32.gmra.mrb[0].mxu0 %v1229
    %v1463 = vpop.f32.mrb[0].mxu0
    %v1464 = vadd.f32 %v1348, %v1463
    %v1465 = vpop.f32.mrb[0].mxu0
    %v1466 = vadd.f32 %v1352, %v1465
    %1467 = vmatprep.mubr.f32.mxu0 %v1232
    %1468 = vmatmul.mubr.f32.gmra.mrb[0].mxu0 %v1231
    %v1469 = vpop.f32.mrb[0].mxu0
    %v1470 = vadd.f32 %v1348, %v1469
    %v1471 = vpop.f32.mrb[0].mxu0
    %v1472 = vadd.f32 %v1352, %v1471
    %1473 = vmatprep.mubr.f32.mxu0 %v1234
    %1474 = vmatmul.mubr.f32.gmra.mrb[0].mxu0 %v1233
    %v1475 = vpop.f32.mrb[0].mxu0
    %v1476 = vadd.f32 %v1348, %v1475
    %v1477 = vpop.f32.mrb[0].mxu0
    %v1478 = vadd.f32 %v1352, %v1477
    %1479 = vmatprep.mubr.f32.mxu0 %v1236
    %1480 = vmatmul.mubr.f32.gmra.mrb[0].mxu0 %v1235
    %v1481 = vpop.f32.mrb[0].mxu0
    %v1482 = vadd.f32 %v1348, %v1481
    %v1483 = vpop.f32.mrb[0].mxu0
    %v1484 = vadd.f32 %v1352, %v1483
    %1485 = vmatprep.mubr.f32.mxu0 %v1238
    %1486 = vmatmul.mubr.f32.gmra.mrb[0].mxu0 %v1237
    %v1487 = vpop.f32.mrb[0].mxu0
    %v1488 = vadd.f32 %v1348, %v1487
    %v1489 = vpop.f32.mrb[0].mxu0
    %v1490 = vadd.f32 %v1352, %v1489
    %1491 = vmatprep.mubr.f32.mxu0 %v1240
    %1492 = vmatmul.mubr.f32.gmra.mrb[0].mxu0 %v1239
    %v1493 = vpop.f32.mrb[0].mxu0
    %v1494 = vadd.f32 %v1348, %v1493
    %v1495 = vpop.f32.mrb[0].mxu0
    %v1496 = vadd.f32 %v1352, %v1495
    %1497 = vmatprep.mubr.f32.mxu0 %v1242
    %1498 = vmatmul.mubr.f32.gmra.mrb[0].mxu0 %v1241
    %v1499 = vpop.f32.mrb[0].mxu0
    %v1500 = vadd.f32 %v1348, %v1499
    %v1501 = vpop.f32.mrb[0].mxu0
    %v1502 = vadd.f32 %v1352, %v1501
    %1503 = vmatprep.mubr.f32.mxu0 %v1244
    %1504 = vmatmul.mubr.f32.gmra.mrb[0].mxu0 %v1243
    %v1505 = vpop.f32.mrb[0].mxu0
    %v1506 = vadd.f32 %v1348, %v1505
    %v1507 = vpop.f32.mrb[0].mxu0
    %v1508 = vadd.f32 %v1352, %v1507
    %1509 = vmatprep.mubr.f32.mxu0 %v1246
    %1510 = vmatmul.mubr.f32.gmra.mrb[0].mxu0 %v1245
    %v1511 = vpop.f32.mrb[0].mxu0
    %v1512 = vadd.f32 %v1348, %v1511
    %v1513 = vpop.f32.mrb[0].mxu0
    %v1514 = vadd.f32 %v1352, %v1513
    %1515 = vmatprep.mubr.f32.mxu0 %v1248
    %1516 = vmatmul.mubr.f32.gmra.mrb[0].mxu0 %v1247
    %v1517 = vpop.f32.mrb[0].mxu0
    %v1518 = vadd.f32 %v1348, %v1517
    %v1519 = vpop.f32.mrb[0].mxu0
    %v1520 = vadd.f32 %v1352, %v1519
    %1521 = vmatprep.mubr.f32.mxu0 %v1250
    %1522 = vmatmul.mubr.f32.gmra.mrb[0].mxu0 %v1249
    %v1523 = vpop.f32.mrb[0].mxu0
    %v1524 = vadd.f32 %v1348, %v1523
    %v1525 = vpop.f32.mrb[0].mxu0
    %v1526 = vadd.f32 %v1352, %v1525
    %1527 = vmatprep.mubr.f32.mxu0 %v1252
    %1528 = vmatmul.mubr.f32.gmra.mrb[0].mxu0 %v1251
    %v1529 = vpop.f32.mrb[0].mxu0
    %v1530 = vadd.f32 %v1348, %v1529
    %v1531 = vpop.f32.mrb[0].mxu0
    %v1532 = vadd.f32 %v1352, %v1531
    %1533 = vmatprep.mubr.f32.mxu0 %v1254
    %1534 = vmatmul.mubr.f32.gmra.mrb[0].mxu0 %v1253
    %v1535 = vpop.f32.mrb[0].mxu0
    %v1536 = vadd.f32 %v1348, %v1535
    %v1537 = vpop.f32.mrb[0].mxu0
    %v1538 = vadd.f32 %v1352, %v1537
    %1539 = vmatprep.mubr.f32.mxu0 %v1256
    %1540 = vmatmul.mubr.f32.gmra.mrb[0].mxu0 %v1255
    %v1541 = vpop.f32.mrb[0].mxu0
    %v1542 = vadd.f32 %v1348, %v1541
    %v1543 = vpop.f32.mrb[0].mxu0
    %v1544 = vadd.f32 %v1352, %v1543
    %1545 = vmatprep.mubr.f32.mxu0 %v1258
    %1546 = vmatmul.mubr.f32.gmra.mrb[0].mxu0 %v1257
    %v1547 = vpop.f32.mrb[0].mxu0
    %v1548 = vadd.f32 %v1348, %v1547
    %v1549 = vpop.f32.mrb[0].mxu0
    %v1550 = vadd.f32 %v1352, %v1549
    %1551 = vmatprep.mubr.f32.mxu0 %v1260
    %1552 = vmatmul.mubr.f32.gmra.mrb[0].mxu0 %v1259
    %v1553 = vpop.f32.mrb[0].mxu0
    %v1554 = vadd.f32 %v1348, %v1553
    %v1555 = vpop.f32.mrb[0].mxu0
    %v1556 = vadd.f32 %v1352, %v1555
    %1557 = vmatprep.mubr.f32.mxu0 %v1262
    %1558 = vmatmul.mubr.f32.gmra.mrb[0].mxu0 %v1261
    %v1559 = vpop.f32.mrb[0].mxu0
    %v1560 = vadd.f32 %v1348, %v1559
    %v1561 = vpop.f32.mrb[0].mxu0
    %v1562 = vadd.f32 %v1352, %v1561
    %1563 = vmatprep.mubr.f32.mxu0 %v1264
    %1564 = vmatmul.mubr.f32.gmra.mrb[0].mxu0 %v1263
    %v1565 = vpop.f32.mrb[0].mxu0
    %v1566 = vadd.f32 %v1348, %v1565
    %v1567 = vpop.f32.mrb[0].mxu0
    %v1568 = vadd.f32 %v1352, %v1567
    %1569 = vmatprep.mubr.f32.mxu0 %v1266
    %1570 = vmatmul.mubr.f32.gmra.mrb[0].mxu0 %v1265
    %v1571 = vpop.f32.mrb[0].mxu0
    %v1572 = vadd.f32 %v1348, %v1571
    %v1573 = vpop.f32.mrb[0].mxu0
    %v1574 = vadd.f32 %v1352, %v1573
    %1575 = vmatprep.mubr.f32.mxu0 %v1268
    %1576 = vmatmul.mubr.f32.gmra.mrb[0].mxu0 %v1267
    %v1577 = vpop.f32.mrb[0].mxu0
    %v1578 = vadd.f32 %v1348, %v1577
    %v1579 = vpop.f32.mrb[0].mxu0
    %v1580 = vadd.f32 %v1352, %v1579
    %1581 = vmatprep.mubr.f32.mxu0 %v1270
    %1582 = vmatmul.mubr.f32.gmra.mrb[0].mxu0 %v1269
    %v1583 = vpop.f32.mrb[0].mxu0
    %v1584 = vadd.f32 %v1348, %v1583
    %v1585 = vpop.f32.mrb[0].mxu0
    %v1586 = vadd.f32 %v1352, %v1585
    %1587 = vmatprep.mubr.f32.mxu0 %v1272
    %1588 = vmatmul.mubr.f32.gmra.mrb[0].mxu0 %v1271
    %v1589 = vpop.f32.mrb[0].mxu0
    %v1590 = vadd.f32 %v1348, %v1589
    %v1591 = vpop.f32.mrb[0].mxu0
    %v1592 = vadd.f32 %v1352, %v1591
    %1593 = vmatprep.mubr.f32.mxu0 %v1274
    %1594 = vmatmul.mubr.f32.gmra.mrb[0].mxu0 %v1273
    %v1595 = vpop.f32.mrb[0].mxu0
    %v1596 = vadd.f32 %v1348, %v1595
    %v1597 = vpop.f32.mrb[0].mxu0
    %v1598 = vadd.f32 %v1352, %v1597
    %1599 = vmatprep.mubr.f32.mxu0 %v1276
    %1600 = vmatmul.mubr.f32.gmra.mrb[0].mxu0 %v1275
    %v1601 = vpop.f32.mrb[0].mxu0
    %v1602 = vadd.f32 %v1348, %v1601
    %v1603 = vpop.f32.mrb[0].mxu0
    %v1604 = vadd.f32 %v1352, %v1603
    %1605 = vmatprep.mubr.f32.mxu0 %v1278
    %1606 = vmatmul.mubr.f32.gmra.mrb[0].mxu0 %v1277
    %v1607 = vpop.f32.mrb[0].mxu0
    %v1608 = vadd.f32 %v1348, %v1607
    %v1609 = vpop.f32.mrb[0].mxu0
    %v1610 = vadd.f32 %v1352, %v1609
    %1611 = vdwg.mxu0
    %v1612 = vmax.f32 %v1422, 0.0
    %v1613 = vmax.f32 %v1424, 0.0
    %v1614 = vmax.f32 %v1428, 0.0
    %v1615 = vmax.f32 %v1430, 0.0
    %v1616 = vmax.f32 %v1434, 0.0
    %v1617 = vmax.f32 %v1436, 0.0
    %v1618 = vmax.f32 %v1440, 0.0
    %v1619 = vmax.f32 %v1442, 0.0
    %v1620 = vmax.f32 %v1446, 0.0
    %v1621 = vmax.f32 %v1448, 0.0
    %v1622 = vmax.f32 %v1452, 0.0
    %v1623 = vmax.f32 %v1454, 0.0
    %v1624 = vmax.f32 %v1458, 0.0
    %v1625 = vmax.f32 %v1460, 0.0
    %v1626 = vmax.f32 %v1464, 0.0
    %v1627 = vmax.f32 %v1466, 0.0
    %v1628 = vmax.f32 %v1470, 0.0
    %v1629 = vmax.f32 %v1472, 0.0
    %v1630 = vmax.f32 %v1476, 0.0
    %v1631 = vmax.f32 %v1478, 0.0
    %v1632 = vmax.f32 %v1482, 0.0
    %v1633 = vmax.f32 %v1484, 0.0
    %v1634 = vmax.f32 %v1488, 0.0
    %v1635 = vmax.f32 %v1490, 0.0
    %v1636 = vmax.f32 %v1494, 0.0
    %v1637 = vmax.f32 %v1496, 0.0
    %v1638 = vmax.f32 %v1500, 0.0
    %v1639 = vmax.f32 %v1502, 0.0
    %v1640 = vmax.f32 %v1506, 0.0
    %v1641 = vmax.f32 %v1508, 0.0
    %v1642 = vmax.f32 %v1512, 0.0
    %v1643 = vmax.f32 %v1514, 0.0
    %v1644 = vmax.f32 %v1518, 0.0
    %v1645 = vmax.f32 %v1520, 0.0
    %v1646 = vmax.f32 %v1524, 0.0
    %v1647 = vmax.f32 %v1526, 0.0
    %v1648 = vmax.f32 %v1530, 0.0
    %v1649 = vmax.f32 %v1532, 0.0
    %v1650 = vmax.f32 %v1536, 0.0
    %v1651 = vmax.f32 %v1538, 0.0
    %v1652 = vmax.f32 %v1542, 0.0
    %v1653 = vmax.f32 %v1544, 0.0
    %v1654 = vmax.f32 %v1548, 0.0
    %v1655 = vmax.f32 %v1550, 0.0
    %v1656 = vmax.f32 %v1554, 0.0
    %v1657 = vmax.f32 %v1556, 0.0
    %v1658 = vmax.f32 %v1560, 0.0
    %v1659 = vmax.f32 %v1562, 0.0
    %v1660 = vmax.f32 %v1566, 0.0
    %v1661 = vmax.f32 %v1568, 0.0
    %v1662 = vmax.f32 %v1572, 0.0
    %v1663 = vmax.f32 %v1574, 0.0
    %v1664 = vmax.f32 %v1578, 0.0
    %v1665 = vmax.f32 %v1580, 0.0
    %v1666 = vmax.f32 %v1584, 0.0
    %v1667 = vmax.f32 %v1586, 0.0
    %v1668 = vmax.f32 %v1590, 0.0
    %v1669 = vmax.f32 %v1592, 0.0
    %v1670 = vmax.f32 %v1596, 0.0
    %v1671 = vmax.f32 %v1598, 0.0
    %v1672 = vmax.f32 %v1602, 0.0
    %v1673 = vmax.f32 %v1604, 0.0
    %v1674 = vmax.f32 %v1608, 0.0
    %v1675 = vmax.f32 %v1610, 0.0
    %v1676 = vld [vmem:[%s5] sm:$0xff]
    %v1677 = vld [vmem:[%s5 + $0x8] sm:$0xff]
    %v1678 = vld [vmem:[%s5 + $0x10] sm:$0xff]
    %v1679 = vld [vmem:[%s5 + $0x18] sm:$0xff]
    %v1680 = vld [vmem:[%s5 + $0x20] sm:$0xff]
    %v1681 = vld [vmem:[%s5 + $0x28] sm:$0xff]
    %v1682 = vld [vmem:[%s5 + $0x30] sm:$0xff]
    %v1683 = vld [vmem:[%s5 + $0x38] sm:$0xff]
    %v1684 = vld [vmem:[%s5 + $0x40] sm:$0xff]
    %v1685 = vld [vmem:[%s5 + $0x48] sm:$0xff]
    %v1686 = vld [vmem:[%s5 + $0x50] sm:$0xff]
    %v1687 = vld [vmem:[%s5 + $0x58] sm:$0xff]
    %v1688 = vld [vmem:[%s5 + $0x60] sm:$0xff]
    %v1689 = vld [vmem:[%s5 + $0x68] sm:$0xff]
    %v1690 = vld [vmem:[%s5 + $0x70] sm:$0xff]
    %v1691 = vld [vmem:[%s5 + $0x78] sm:$0xff]
    %v1692 = vld [vmem:[%s5 + $0x80] sm:$0xff]
    %v1693 = vld [vmem:[%s5 + $0x88] sm:$0xff]
    %v1694 = vld [vmem:[%s5 + $0x90] sm:$0xff]
    %v1695 = vld [vmem:[%s5 + $0x98] sm:$0xff]
    %v1696 = vld [vmem:[%s5 + $0xa0] sm:$0xff]
    %v1697 = vld [vmem:[%s5 + $0xa8] sm:$0xff]
    %v1698 = vld [vmem:[%s5 + $0xb0] sm:$0xff]
    %v1699 = vld [vmem:[%s5 + $0xb8] sm:$0xff]
    %v1700 = vld [vmem:[%s5 + $0xc0] sm:$0xff]
    %v1701 = vld [vmem:[%s5 + $0xc8] sm:$0xff]
    %v1702 = vld [vmem:[%s5 + $0xd0] sm:$0xff]
    %v1703 = vld [vmem:[%s5 + $0xd8] sm:$0xff]
    %v1704 = vld [vmem:[%s5 + $0xe0] sm:$0xff]
    %v1705 = vld [vmem:[%s5 + $0xe8] sm:$0xff]
    %v1706 = vld [vmem:[%s5 + $0xf0] sm:$0xff]
    %v1707 = vld [vmem:[%s5 + $0xf8] sm:$0xff]
    %v1708 = vld [vmem:[%s6] sm:$0x1]
    %v1710 = vlaneseq
    %v1711 = vshrl.u32 %v1710, 7
    %v1712 = vsub.s32 0, %v1711
    %v1713 = vrot.slane %v1708, %v1712
    %1715 = vmatprep.subr.mxu0 0.0
    %1716 = vmatpush1.msra.mxu0 %v1676
    %1717 = vmatprep.subr.mxu0 0.0
    %1718 = vmatpush1.msra.mxu0 %v1677
    %1719 = vmatprep.subr.mxu0 0.0
    %1720 = vmatpush1.msra.mxu0 %v1678
    %1721 = vmatprep.subr.mxu0 0.0
    %1722 = vmatpush1.msra.mxu0 %v1679
    %1723 = vmatprep.subr.mxu0 0.0
    %1724 = vmatpush1.msra.mxu0 %v1680
    %1725 = vmatprep.subr.mxu0 0.0
    %1726 = vmatpush1.msra.mxu0 %v1681
    %1727 = vmatprep.subr.mxu0 0.0
    %1728 = vmatpush1.msra.mxu0 %v1682
    %1729 = vmatprep.subr.mxu0 0.0
    %1730 = vmatpush1.msra.mxu0 %v1683
    %1731 = vmatprep.subr.mxu0 0.0
    %1732 = vmatpush1.msra.mxu0 %v1684
    %1733 = vmatprep.subr.mxu0 0.0
    %1734 = vmatpush1.msra.mxu0 %v1685
    %1735 = vmatprep.subr.mxu0 0.0
    %1736 = vmatpush1.msra.mxu0 %v1686
    %1737 = vmatprep.subr.mxu0 0.0
    %1738 = vmatpush1.msra.mxu0 %v1687
    %1739 = vmatprep.subr.mxu0 0.0
    %1740 = vmatpush1.msra.mxu0 %v1688
    %1741 = vmatprep.subr.mxu0 0.0
    %1742 = vmatpush1.msra.mxu0 %v1689
    %1743 = vmatprep.subr.mxu0 0.0
    %1744 = vmatpush1.msra.mxu0 %v1690
    %1745 = vmatprep.subr.mxu0 0.0
    %1746 = vmatpush1.msra.mxu0 %v1691
    %1747 = vmatprep.subr.mxu0 0.0
    %1748 = vmatpush1.msra.mxu0 %v1692
    %1749 = vmatprep.subr.mxu0 0.0
    %1750 = vmatpush1.msra.mxu0 %v1693
    %1751 = vmatprep.subr.mxu0 0.0
    %1752 = vmatpush1.msra.mxu0 %v1694
    %1753 = vmatprep.subr.mxu0 0.0
    %1754 = vmatpush1.msra.mxu0 %v1695
    %1755 = vmatprep.subr.mxu0 0.0
    %1756 = vmatpush1.msra.mxu0 %v1696
    %1757 = vmatprep.subr.mxu0 0.0
    %1758 = vmatpush1.msra.mxu0 %v1697
    %1759 = vmatprep.subr.mxu0 0.0
    %1760 = vmatpush1.msra.mxu0 %v1698
    %1761 = vmatprep.subr.mxu0 0.0
    %1762 = vmatpush1.msra.mxu0 %v1699
    %1763 = vmatprep.subr.mxu0 0.0
    %1764 = vmatpush1.msra.mxu0 %v1700
    %1765 = vmatprep.subr.mxu0 0.0
    %1766 = vmatpush1.msra.mxu0 %v1701
    %1767 = vmatprep.subr.mxu0 0.0
    %1768 = vmatpush1.msra.mxu0 %v1702
    %1769 = vmatprep.subr.mxu0 0.0
    %1770 = vmatpush1.msra.mxu0 %v1703
    %1771 = vmatprep.subr.mxu0 0.0
    %1772 = vmatpush1.msra.mxu0 %v1704
    %1773 = vmatprep.subr.mxu0 0.0
    %1774 = vmatpush1.msra.mxu0 %v1705
    %1775 = vmatprep.subr.mxu0 0.0
    %1776 = vmatpush1.msra.mxu0 %v1706
    %1777 = vmatprep.subr.mxu0 0.0
    %1778 = vmatpush1.msra.mxu0 %v1707
    %1779 = vmatprep.mubr.f32.mxu0 %v1613
    %1780 = vmatmul.mubr.f32.gmra.mrb[0].mxu0 %v1612
    %v1781 = vpop.f32.mrb[0].mxu0
    %v1782 = vadd.f32 %v1713, %v1781
    %v1783 = vpop.f32.mrb[0].mxu0
    %1784 = vmatprep.mubr.f32.mxu0 %v1615
    %1785 = vmatmul.mubr.f32.gmra.mrb[0].mxu0 %v1614
    %v1786 = vpop.f32.mrb[0].mxu0
    %v1787 = vadd.f32 %v1713, %v1786
    %v1788 = vpop.f32.mrb[0].mxu0
    %1789 = vmatprep.mubr.f32.mxu0 %v1617
    %1790 = vmatmul.mubr.f32.gmra.mrb[0].mxu0 %v1616
    %v1791 = vpop.f32.mrb[0].mxu0
    %v1792 = vadd.f32 %v1713, %v1791
    %v1793 = vpop.f32.mrb[0].mxu0
    %1794 = vmatprep.mubr.f32.mxu0 %v1619
    %1795 = vmatmul.mubr.f32.gmra.mrb[0].mxu0 %v1618
    %v1796 = vpop.f32.mrb[0].mxu0
    %v1797 = vadd.f32 %v1713, %v1796
    %v1798 = vpop.f32.mrb[0].mxu0
    %1799 = vmatprep.mubr.f32.mxu0 %v1621
    %1800 = vmatmul.mubr.f32.gmra.mrb[0].mxu0 %v1620
    %v1801 = vpop.f32.mrb[0].mxu0
    %v1802 = vadd.f32 %v1713, %v1801
    %v1803 = vpop.f32.mrb[0].mxu0
    %1804 = vmatprep.mubr.f32.mxu0 %v1623
    %1805 = vmatmul.mubr.f32.gmra.mrb[0].mxu0 %v1622
    %v1806 = vpop.f32.mrb[0].mxu0
    %v1807 = vadd.f32 %v1713, %v1806
    %v1808 = vpop.f32.mrb[0].mxu0
    %1809 = vmatprep.mubr.f32.mxu0 %v1625
    %1810 = vmatmul.mubr.f32.gmra.mrb[0].mxu0 %v1624
    %v1811 = vpop.f32.mrb[0].mxu0
    %v1812 = vadd.f32 %v1713, %v1811
    %v1813 = vpop.f32.mrb[0].mxu0
    %1814 = vmatprep.mubr.f32.mxu0 %v1627
    %1815 = vmatmul.mubr.f32.gmra.mrb[0].mxu0 %v1626
    %v1816 = vpop.f32.mrb[0].mxu0
    %v1817 = vadd.f32 %v1713, %v1816
    %v1818 = vpop.f32.mrb[0].mxu0
    %1819 = vmatprep.mubr.f32.mxu0 %v1629
    %1820 = vmatmul.mubr.f32.gmra.mrb[0].mxu0 %v1628
    %v1821 = vpop.f32.mrb[0].mxu0
    %v1822 = vadd.f32 %v1713, %v1821
    %v1823 = vpop.f32.mrb[0].mxu0
    %1824 = vmatprep.mubr.f32.mxu0 %v1631
    %1825 = vmatmul.mubr.f32.gmra.mrb[0].mxu0 %v1630
    %v1826 = vpop.f32.mrb[0].mxu0
    %v1827 = vadd.f32 %v1713, %v1826
    %v1828 = vpop.f32.mrb[0].mxu0
    %1829 = vmatprep.mubr.f32.mxu0 %v1633
    %1830 = vmatmul.mubr.f32.gmra.mrb[0].mxu0 %v1632
    %v1831 = vpop.f32.mrb[0].mxu0
    %v1832 = vadd.f32 %v1713, %v1831
    %v1833 = vpop.f32.mrb[0].mxu0
    %1834 = vmatprep.mubr.f32.mxu0 %v1635
    %1835 = vmatmul.mubr.f32.gmra.mrb[0].mxu0 %v1634
    %v1836 = vpop.f32.mrb[0].mxu0
    %v1837 = vadd.f32 %v1713, %v1836
    %v1838 = vpop.f32.mrb[0].mxu0
    %1839 = vmatprep.mubr.f32.mxu0 %v1637
    %1840 = vmatmul.mubr.f32.gmra.mrb[0].mxu0 %v1636
    %v1841 = vpop.f32.mrb[0].mxu0
    %v1842 = vadd.f32 %v1713, %v1841
    %v1843 = vpop.f32.mrb[0].mxu0
    %1844 = vmatprep.mubr.f32.mxu0 %v1639
    %1845 = vmatmul.mubr.f32.gmra.mrb[0].mxu0 %v1638
    %v1846 = vpop.f32.mrb[0].mxu0
    %v1847 = vadd.f32 %v1713, %v1846
    %v1848 = vpop.f32.mrb[0].mxu0
    %1849 = vmatprep.mubr.f32.mxu0 %v1641
    %1850 = vmatmul.mubr.f32.gmra.mrb[0].mxu0 %v1640
    %v1851 = vpop.f32.mrb[0].mxu0
    %v1852 = vadd.f32 %v1713, %v1851
    %v1853 = vpop.f32.mrb[0].mxu0
    %1854 = vmatprep.mubr.f32.mxu0 %v1643
    %1855 = vmatmul.mubr.f32.gmra.mrb[0].mxu0 %v1642
    %v1856 = vpop.f32.mrb[0].mxu0
    %v1857 = vadd.f32 %v1713, %v1856
    %v1858 = vpop.f32.mrb[0].mxu0
    %1859 = vmatprep.mubr.f32.mxu0 %v1645
    %1860 = vmatmul.mubr.f32.gmra.mrb[0].mxu0 %v1644
    %v1861 = vpop.f32.mrb[0].mxu0
    %v1862 = vadd.f32 %v1713, %v1861
    %v1863 = vpop.f32.mrb[0].mxu0
    %1864 = vmatprep.mubr.f32.mxu0 %v1647
    %1865 = vmatmul.mubr.f32.gmra.mrb[0].mxu0 %v1646
    %v1866 = vpop.f32.mrb[0].mxu0
    %v1867 = vadd.f32 %v1713, %v1866
    %v1868 = vpop.f32.mrb[0].mxu0
    %1869 = vmatprep.mubr.f32.mxu0 %v1649
    %1870 = vmatmul.mubr.f32.gmra.mrb[0].mxu0 %v1648
    %v1871 = vpop.f32.mrb[0].mxu0
    %v1872 = vadd.f32 %v1713, %v1871
    %v1873 = vpop.f32.mrb[0].mxu0
    %1874 = vmatprep.mubr.f32.mxu0 %v1651
    %1875 = vmatmul.mubr.f32.gmra.mrb[0].mxu0 %v1650
    %v1876 = vpop.f32.mrb[0].mxu0
    %v1877 = vadd.f32 %v1713, %v1876
    %v1878 = vpop.f32.mrb[0].mxu0
    %1879 = vmatprep.mubr.f32.mxu0 %v1653
    %1880 = vmatmul.mubr.f32.gmra.mrb[0].mxu0 %v1652
    %v1881 = vpop.f32.mrb[0].mxu0
    %v1882 = vadd.f32 %v1713, %v1881
    %v1883 = vpop.f32.mrb[0].mxu0
    %1884 = vmatprep.mubr.f32.mxu0 %v1655
    %1885 = vmatmul.mubr.f32.gmra.mrb[0].mxu0 %v1654
    %v1886 = vpop.f32.mrb[0].mxu0
    %v1887 = vadd.f32 %v1713, %v1886
    %v1888 = vpop.f32.mrb[0].mxu0
    %1889 = vmatprep.mubr.f32.mxu0 %v1657
    %1890 = vmatmul.mubr.f32.gmra.mrb[0].mxu0 %v1656
    %v1891 = vpop.f32.mrb[0].mxu0
    %v1892 = vadd.f32 %v1713, %v1891
    %v1893 = vpop.f32.mrb[0].mxu0
    %1894 = vmatprep.mubr.f32.mxu0 %v1659
    %1895 = vmatmul.mubr.f32.gmra.mrb[0].mxu0 %v1658
    %v1896 = vpop.f32.mrb[0].mxu0
    %v1897 = vadd.f32 %v1713, %v1896
    %v1898 = vpop.f32.mrb[0].mxu0
    %1899 = vmatprep.mubr.f32.mxu0 %v1661
    %1900 = vmatmul.mubr.f32.gmra.mrb[0].mxu0 %v1660
    %v1901 = vpop.f32.mrb[0].mxu0
    %v1902 = vadd.f32 %v1713, %v1901
    %v1903 = vpop.f32.mrb[0].mxu0
    %1904 = vmatprep.mubr.f32.mxu0 %v1663
    %1905 = vmatmul.mubr.f32.gmra.mrb[0].mxu0 %v1662
    %v1906 = vpop.f32.mrb[0].mxu0
    %v1907 = vadd.f32 %v1713, %v1906
    %v1908 = vpop.f32.mrb[0].mxu0
    %1909 = vmatprep.mubr.f32.mxu0 %v1665
    %1910 = vmatmul.mubr.f32.gmra.mrb[0].mxu0 %v1664
    %v1911 = vpop.f32.mrb[0].mxu0
    %v1912 = vadd.f32 %v1713, %v1911
    %v1913 = vpop.f32.mrb[0].mxu0
    %1914 = vmatprep.mubr.f32.mxu0 %v1667
    %1915 = vmatmul.mubr.f32.gmra.mrb[0].mxu0 %v1666
    %v1916 = vpop.f32.mrb[0].mxu0
    %v1917 = vadd.f32 %v1713, %v1916
    %v1918 = vpop.f32.mrb[0].mxu0
    %1919 = vmatprep.mubr.f32.mxu0 %v1669
    %1920 = vmatmul.mubr.f32.gmra.mrb[0].mxu0 %v1668
    %v1921 = vpop.f32.mrb[0].mxu0
    %v1922 = vadd.f32 %v1713, %v1921
    %v1923 = vpop.f32.mrb[0].mxu0
    %1924 = vmatprep.mubr.f32.mxu0 %v1671
    %1925 = vmatmul.mubr.f32.gmra.mrb[0].mxu0 %v1670
    %v1926 = vpop.f32.mrb[0].mxu0
    %v1927 = vadd.f32 %v1713, %v1926
    %v1928 = vpop.f32.mrb[0].mxu0
    %1929 = vmatprep.mubr.f32.mxu0 %v1673
    %1930 = vmatmul.mubr.f32.gmra.mrb[0].mxu0 %v1672
    %v1931 = vpop.f32.mrb[0].mxu0
    %v1932 = vadd.f32 %v1713, %v1931
    %v1933 = vpop.f32.mrb[0].mxu0
    %1934 = vmatprep.mubr.f32.mxu0 %v1675
    %1935 = vmatmul.mubr.f32.gmra.mrb[0].mxu0 %v1674
    %v1936 = vpop.f32.mrb[0].mxu0
    %v1937 = vadd.f32 %v1713, %v1936
    %v1938 = vpop.f32.mrb[0].mxu0
    %1939 = vdwg.mxu0
    %1940 = vmax.xlane.f32.xlu0 %v1782
    %v1941 = vpop.xlane.xlu0 %1940
    %1942 = vmax.xlane.f32.xlu0 %v1787
    %v1943 = vpop.xlane.xlu0 %1942
    %1944 = vmax.xlane.f32.xlu0 %v1792
    %v1945 = vpop.xlane.xlu0 %1944
    %1946 = vmax.xlane.f32.xlu0 %v1797
    %v1947 = vpop.xlane.xlu0 %1946
    %1948 = vmax.xlane.f32.xlu0 %v1802
    %v1949 = vpop.xlane.xlu0 %1948
    %1950 = vmax.xlane.f32.xlu0 %v1807
    %v1951 = vpop.xlane.xlu0 %1950
    %1952 = vmax.xlane.f32.xlu0 %v1812
    %v1953 = vpop.xlane.xlu0 %1952
    %1954 = vmax.xlane.f32.xlu0 %v1817
    %v1955 = vpop.xlane.xlu0 %1954
    %1956 = vmax.xlane.f32.xlu0 %v1822
    %v1957 = vpop.xlane.xlu0 %1956
    %1958 = vmax.xlane.f32.xlu0 %v1827
    %v1959 = vpop.xlane.xlu0 %1958
    %1960 = vmax.xlane.f32.xlu0 %v1832
    %v1961 = vpop.xlane.xlu0 %1960
    %1962 = vmax.xlane.f32.xlu0 %v1837
    %v1963 = vpop.xlane.xlu0 %1962
    %1964 = vmax.xlane.f32.xlu0 %v1842
    %v1965 = vpop.xlane.xlu0 %1964
    %1966 = vmax.xlane.f32.xlu0 %v1847
    %v1967 = vpop.xlane.xlu0 %1966
    %1968 = vmax.xlane.f32.xlu0 %v1852
    %v1969 = vpop.xlane.xlu0 %1968
    %1970 = vmax.xlane.f32.xlu0 %v1857
    %v1971 = vpop.xlane.xlu0 %1970
    %1972 = vmax.xlane.f32.xlu0 %v1862
    %v1973 = vpop.xlane.xlu0 %1972
    %1974 = vmax.xlane.f32.xlu0 %v1867
    %v1975 = vpop.xlane.xlu0 %1974
    %1976 = vmax.xlane.f32.xlu0 %v1872
    %v1977 = vpop.xlane.xlu0 %1976
    %1978 = vmax.xlane.f32.xlu0 %v1877
    %v1979 = vpop.xlane.xlu0 %1978
    %1980 = vmax.xlane.f32.xlu0 %v1882
    %v1981 = vpop.xlane.xlu0 %1980
    %1982 = vmax.xlane.f32.xlu0 %v1887
    %v1983 = vpop.xlane.xlu0 %1982
    %1984 = vmax.xlane.f32.xlu0 %v1892
    %v1985 = vpop.xlane.xlu0 %1984
    %1986 = vmax.xlane.f32.xlu0 %v1897
    %v1987 = vpop.xlane.xlu0 %1986
    %1988 = vmax.xlane.f32.xlu0 %v1902
    %v1989 = vpop.xlane.xlu0 %1988
    %1990 = vmax.xlane.f32.xlu0 %v1907
    %v1991 = vpop.xlane.xlu0 %1990
    %1992 = vmax.xlane.f32.xlu0 %v1912
    %v1993 = vpop.xlane.xlu0 %1992
    %1994 = vmax.xlane.f32.xlu0 %v1917
    %v1995 = vpop.xlane.xlu0 %1994
    %1996 = vmax.xlane.f32.xlu0 %v1922
    %v1997 = vpop.xlane.xlu0 %1996
    %1998 = vmax.xlane.f32.xlu0 %v1927
    %v1999 = vpop.xlane.xlu0 %1998
    %2000 = vmax.xlane.f32.xlu0 %v1932
    %v2001 = vpop.xlane.xlu0 %2000
    %2002 = vmax.xlane.f32.xlu0 %v1937
    %v2003 = vpop.xlane.xlu0 %2002
    %v2004 = vsub.f32 %v1782, %v1941
    %v2005 = vsub.f32 %v1787, %v1943
    %v2006 = vsub.f32 %v1792, %v1945
    %v2007 = vsub.f32 %v1797, %v1947
    %v2008 = vsub.f32 %v1802, %v1949
    %v2009 = vsub.f32 %v1807, %v1951
    %v2010 = vsub.f32 %v1812, %v1953
    %v2011 = vsub.f32 %v1817, %v1955
    %v2012 = vsub.f32 %v1822, %v1957
    %v2013 = vsub.f32 %v1827, %v1959
    %v2014 = vsub.f32 %v1832, %v1961
    %v2015 = vsub.f32 %v1837, %v1963
    %v2016 = vsub.f32 %v1842, %v1965
    %v2017 = vsub.f32 %v1847, %v1967
    %v2018 = vsub.f32 %v1852, %v1969
    %v2019 = vsub.f32 %v1857, %v1971
    %v2020 = vsub.f32 %v1862, %v1973
    %v2021 = vsub.f32 %v1867, %v1975
    %v2022 = vsub.f32 %v1872, %v1977
    %v2023 = vsub.f32 %v1877, %v1979
    %v2024 = vsub.f32 %v1882, %v1981
    %v2025 = vsub.f32 %v1887, %v1983
    %v2026 = vsub.f32 %v1892, %v1985
    %v2027 = vsub.f32 %v1897, %v1987
    %v2028 = vsub.f32 %v1902, %v1989
    %v2029 = vsub.f32 %v1907, %v1991
    %v2030 = vsub.f32 %v1912, %v1993
    %v2031 = vsub.f32 %v1917, %v1995
    %v2032 = vsub.f32 %v1922, %v1997
    %v2033 = vsub.f32 %v1927, %v1999
    %v2034 = vsub.f32 %v1932, %v2001
    %v2035 = vsub.f32 %v1937, %v2003
    %v2036 = vmul.f32 %v2004, 1.442695
    %v2037 = vpow.pop %v2036
    %v2038 = vmul.f32 %v2005, 1.442695
    %v2039 = vpow.pop %v2038
    %v2040 = vmul.f32 %v2006, 1.442695
    %v2041 = vpow.pop %v2040
    %v2042 = vmul.f32 %v2007, 1.442695
    %v2043 = vpow.pop %v2042
    %v2044 = vmul.f32 %v2008, 1.442695
    %v2045 = vpow.pop %v2044
    %v2046 = vmul.f32 %v2009, 1.442695
    %v2047 = vpow.pop %v2046
    %v2048 = vmul.f32 %v2010, 1.442695
    %v2049 = vpow.pop %v2048
    %v2050 = vmul.f32 %v2011, 1.442695
    %v2051 = vpow.pop %v2050
    %v2052 = vmul.f32 %v2012, 1.442695
    %v2053 = vpow.pop %v2052
    %v2054 = vmul.f32 %v2013, 1.442695
    %v2055 = vpow.pop %v2054
    %v2056 = vmul.f32 %v2014, 1.442695
    %v2057 = vpow.pop %v2056
    %v2058 = vmul.f32 %v2015, 1.442695
    %v2059 = vpow.pop %v2058
    %v2060 = vmul.f32 %v2016, 1.442695
    %v2061 = vpow.pop %v2060
    %v2062 = vmul.f32 %v2017, 1.442695
    %v2063 = vpow.pop %v2062
    %v2064 = vmul.f32 %v2018, 1.442695
    %v2065 = vpow.pop %v2064
    %v2066 = vmul.f32 %v2019, 1.442695
    %v2067 = vpow.pop %v2066
    %v2068 = vmul.f32 %v2020, 1.442695
    %v2069 = vpow.pop %v2068
    %v2070 = vmul.f32 %v2021, 1.442695
    %v2071 = vpow.pop %v2070
    %v2072 = vmul.f32 %v2022, 1.442695
    %v2073 = vpow.pop %v2072
    %v2074 = vmul.f32 %v2023, 1.442695
    %v2075 = vpow.pop %v2074
    %v2076 = vmul.f32 %v2024, 1.442695
    %v2077 = vpow.pop %v2076
    %v2078 = vmul.f32 %v2025, 1.442695
    %v2079 = vpow.pop %v2078
    %v2080 = vmul.f32 %v2026, 1.442695
    %v2081 = vpow.pop %v2080
    %v2082 = vmul.f32 %v2027, 1.442695
    %v2083 = vpow.pop %v2082
    %v2084 = vmul.f32 %v2028, 1.442695
    %v2085 = vpow.pop %v2084
    %v2086 = vmul.f32 %v2029, 1.442695
    %v2087 = vpow.pop %v2086
    %v2088 = vmul.f32 %v2030, 1.442695
    %v2089 = vpow.pop %v2088
    %v2090 = vmul.f32 %v2031, 1.442695
    %v2091 = vpow.pop %v2090
    %v2092 = vmul.f32 %v2032, 1.442695
    %v2093 = vpow.pop %v2092
    %v2094 = vmul.f32 %v2033, 1.442695
    %v2095 = vpow.pop %v2094
    %v2096 = vmul.f32 %v2034, 1.442695
    %v2097 = vpow.pop %v2096
    %v2098 = vmul.f32 %v2035, 1.442695
    %v2099 = vpow.pop %v2098
    %2100 = vadd.xlane.f32.xlu0 %v2037
    %v2101 = vpop.xlane.xlu0 %2100
    %2102 = vadd.xlane.f32.xlu0 %v2039
    %v2103 = vpop.xlane.xlu0 %2102
    %2104 = vadd.xlane.f32.xlu0 %v2041
    %v2105 = vpop.xlane.xlu0 %2104
    %2106 = vadd.xlane.f32.xlu0 %v2043
    %v2107 = vpop.xlane.xlu0 %2106
    %2108 = vadd.xlane.f32.xlu0 %v2045
    %v2109 = vpop.xlane.xlu0 %2108
    %2110 = vadd.xlane.f32.xlu0 %v2047
    %v2111 = vpop.xlane.xlu0 %2110
    %2112 = vadd.xlane.f32.xlu0 %v2049
    %v2113 = vpop.xlane.xlu0 %2112
    %2114 = vadd.xlane.f32.xlu0 %v2051
    %v2115 = vpop.xlane.xlu0 %2114
    %2116 = vadd.xlane.f32.xlu0 %v2053
    %v2117 = vpop.xlane.xlu0 %2116
    %2118 = vadd.xlane.f32.xlu0 %v2055
    %v2119 = vpop.xlane.xlu0 %2118
    %2120 = vadd.xlane.f32.xlu0 %v2057
    %v2121 = vpop.xlane.xlu0 %2120
    %2122 = vadd.xlane.f32.xlu0 %v2059
    %v2123 = vpop.xlane.xlu0 %2122
    %2124 = vadd.xlane.f32.xlu0 %v2061
    %v2125 = vpop.xlane.xlu0 %2124
    %2126 = vadd.xlane.f32.xlu0 %v2063
    %v2127 = vpop.xlane.xlu0 %2126
    %2128 = vadd.xlane.f32.xlu0 %v2065
    %v2129 = vpop.xlane.xlu0 %2128
    %2130 = vadd.xlane.f32.xlu0 %v2067
    %v2131 = vpop.xlane.xlu0 %2130
    %2132 = vadd.xlane.f32.xlu0 %v2069
    %v2133 = vpop.xlane.xlu0 %2132
    %2134 = vadd.xlane.f32.xlu0 %v2071
    %v2135 = vpop.xlane.xlu0 %2134
    %2136 = vadd.xlane.f32.xlu0 %v2073
    %v2137 = vpop.xlane.xlu0 %2136
    %2138 = vadd.xlane.f32.xlu0 %v2075
    %v2139 = vpop.xlane.xlu0 %2138
    %2140 = vadd.xlane.f32.xlu0 %v2077
    %v2141 = vpop.xlane.xlu0 %2140
    %2142 = vadd.xlane.f32.xlu0 %v2079
    %v2143 = vpop.xlane.xlu0 %2142
    %2144 = vadd.xlane.f32.xlu0 %v2081
    %v2145 = vpop.xlane.xlu0 %2144
    %2146 = vadd.xlane.f32.xlu0 %v2083
    %v2147 = vpop.xlane.xlu0 %2146
    %2148 = vadd.xlane.f32.xlu0 %v2085
    %v2149 = vpop.xlane.xlu0 %2148
    %2150 = vadd.xlane.f32.xlu0 %v2087
    %v2151 = vpop.xlane.xlu0 %2150
    %2152 = vadd.xlane.f32.xlu0 %v2089
    %v2153 = vpop.xlane.xlu0 %2152
    %2154 = vadd.xlane.f32.xlu0 %v2091
    %v2155 = vpop.xlane.xlu0 %2154
    %2156 = vadd.xlane.f32.xlu0 %v2093
    %v2157 = vpop.xlane.xlu0 %2156
    %2158 = vadd.xlane.f32.xlu0 %v2095
    %v2159 = vpop.xlane.xlu0 %2158
    %2160 = vadd.xlane.f32.xlu0 %v2097
    %v2161 = vpop.xlane.xlu0 %2160
    %2162 = vadd.xlane.f32.xlu0 %v2099
    %v2163 = vpop.xlane.xlu0 %2162
    %v2164 = vrcp.pop %v2101
    %v2165 = vmul.f32 %v2037, %v2164
    %v2166 = vrcp.pop %v2103
    %v2167 = vmul.f32 %v2039, %v2166
    %v2168 = vrcp.pop %v2105
    %v2169 = vmul.f32 %v2041, %v2168
    %v2170 = vrcp.pop %v2107
    %v2171 = vmul.f32 %v2043, %v2170
    %v2172 = vrcp.pop %v2109
    %v2173 = vmul.f32 %v2045, %v2172
    %v2174 = vrcp.pop %v2111
    %v2175 = vmul.f32 %v2047, %v2174
    %v2176 = vrcp.pop %v2113
    %v2177 = vmul.f32 %v2049, %v2176
    %v2178 = vrcp.pop %v2115
    %v2179 = vmul.f32 %v2051, %v2178
    %v2180 = vrcp.pop %v2117
    %v2181 = vmul.f32 %v2053, %v2180
    %v2182 = vrcp.pop %v2119
    %v2183 = vmul.f32 %v2055, %v2182
    %v2184 = vrcp.pop %v2121
    %v2185 = vmul.f32 %v2057, %v2184
    %v2186 = vrcp.pop %v2123
    %v2187 = vmul.f32 %v2059, %v2186
    %v2188 = vrcp.pop %v2125
    %v2189 = vmul.f32 %v2061, %v2188
    %v2190 = vrcp.pop %v2127
    %v2191 = vmul.f32 %v2063, %v2190
    %v2192 = vrcp.pop %v2129
    %v2193 = vmul.f32 %v2065, %v2192
    %v2194 = vrcp.pop %v2131
    %v2195 = vmul.f32 %v2067, %v2194
    %v2196 = vrcp.pop %v2133
    %v2197 = vmul.f32 %v2069, %v2196
    %v2198 = vrcp.pop %v2135
    %v2199 = vmul.f32 %v2071, %v2198
    %v2200 = vrcp.pop %v2137
    %v2201 = vmul.f32 %v2073, %v2200
    %v2202 = vrcp.pop %v2139
    %v2203 = vmul.f32 %v2075, %v2202
    %v2204 = vrcp.pop %v2141
    %v2205 = vmul.f32 %v2077, %v2204
    %v2206 = vrcp.pop %v2143
    %v2207 = vmul.f32 %v2079, %v2206
    %v2208 = vrcp.pop %v2145
    %v2209 = vmul.f32 %v2081, %v2208
    %v2210 = vrcp.pop %v2147
    %v2211 = vmul.f32 %v2083, %v2210
    %v2212 = vrcp.pop %v2149
    %v2213 = vmul.f32 %v2085, %v2212
    %v2214 = vrcp.pop %v2151
    %v2215 = vmul.f32 %v2087, %v2214
    %v2216 = vrcp.pop %v2153
    %v2217 = vmul.f32 %v2089, %v2216
    %v2218 = vrcp.pop %v2155
    %v2219 = vmul.f32 %v2091, %v2218
    %v2220 = vrcp.pop %v2157
    %v2221 = vmul.f32 %v2093, %v2220
    %v2222 = vrcp.pop %v2159
    %v2223 = vmul.f32 %v2095, %v2222
    %v2224 = vrcp.pop %v2161
    %v2225 = vmul.f32 %v2097, %v2224
    %v2226 = vrcp.pop %v2163
    %v2227 = vmul.f32 %v2099, %v2226
    %2228 = vst [vmem:[#allocation5] sm:$0xff] %v2165
    %2229 = vst [vmem:[#allocation5 + $0x8] sm:$0xff] %v2167
    %2230 = vst [vmem:[#allocation5 + $0x10] sm:$0xff] %v2169
    %2231 = vst [vmem:[#allocation5 + $0x18] sm:$0xff] %v2171
    %2232 = vst [vmem:[#allocation5 + $0x20] sm:$0xff] %v2173
    %2233 = vst [vmem:[#allocation5 + $0x28] sm:$0xff] %v2175
    %2234 = vst [vmem:[#allocation5 + $0x30] sm:$0xff] %v2177
    %2235 = vst [vmem:[#allocation5 + $0x38] sm:$0xff] %v2179
    %2236 = vst [vmem:[#allocation5 + $0x40] sm:$0xff] %v2181
    %2237 = vst [vmem:[#allocation5 + $0x48] sm:$0xff] %v2183
    %2238 = vst [vmem:[#allocation5 + $0x50] sm:$0xff] %v2185
    %2239 = vst [vmem:[#allocation5 + $0x58] sm:$0xff] %v2187
    %2240 = vst [vmem:[#allocation5 + $0x60] sm:$0xff] %v2189
    %2241 = vst [vmem:[#allocation5 + $0x68] sm:$0xff] %v2191
    %2242 = vst [vmem:[#allocation5 + $0x70] sm:$0xff] %v2193
    %2243 = vst [vmem:[#allocation5 + $0x78] sm:$0xff] %v2195
    %2244 = vst [vmem:[#allocation5 + $0x80] sm:$0xff] %v2197
    %2245 = vst [vmem:[#allocation5 + $0x88] sm:$0xff] %v2199
    %2246 = vst [vmem:[#allocation5 + $0x90] sm:$0xff] %v2201
    %2247 = vst [vmem:[#allocation5 + $0x98] sm:$0xff] %v2203
    %2248 = vst [vmem:[#allocation5 + $0xa0] sm:$0xff] %v2205
    %2249 = vst [vmem:[#allocation5 + $0xa8] sm:$0xff] %v2207
    %2250 = vst [vmem:[#allocation5 + $0xb0] sm:$0xff] %v2209
    %2251 = vst [vmem:[#allocation5 + $0xb8] sm:$0xff] %v2211
    %2252 = vst [vmem:[#allocation5 + $0xc0] sm:$0xff] %v2213
    %2253 = vst [vmem:[#allocation5 + $0xc8] sm:$0xff] %v2215
    %2254 = vst [vmem:[#allocation5 + $0xd0] sm:$0xff] %v2217
    %2255 = vst [vmem:[#allocation5 + $0xd8] sm:$0xff] %v2219
    %2256 = vst [vmem:[#allocation5 + $0xe0] sm:$0xff] %v2221
    %2257 = vst [vmem:[#allocation5 + $0xe8] sm:$0xff] %v2223
    %2258 = vst [vmem:[#allocation5 + $0xf0] sm:$0xff] %v2225
    %2259 = vst [vmem:[#allocation5 + $0xf8] sm:$0xff] %v2227
    // Predicated region
    $region34: #{tpu_custom_call.1} parent=1 // pred_check
      _
    $region35: #{tpu_custom_call.1} parent=1 // pred_check_branch
      %2261 = sbr.rel (0) target = $region37
    $region36: #{tpu_custom_call.1} parent=1 // pred_region
      %s2263 = ssub.s32 4096, 4096
      %2264 = vsyncadd [#allocation4], %s2263
      %s2265 = sshll.u32 [#allocation5], 4
      %s2266 = int_to_ptr.vmem [resolvable:$true] %s2265
      %2271 = dma.vmem_to_hbm [thread:$0]  %s2266, 4096, %s7, [#allocation4], 128, 128, 8
    $region37: #{tpu_custom_call.1} parent=1 // pred_fallthru
      _
    // Predicated region
    $region38: #{tpu_custom_call.1} parent=1 // pred_check
      _
    $region39: #{tpu_custom_call.1} parent=1 // pred_check_branch
      %2273 = sbr.rel (0) target = $region41
    $region40: #{tpu_custom_call.1} parent=1 // pred_region
      %2274 = dma.done [#allocation4], 4096
    $region41: #{tpu_custom_call.1} parent=1 // pred_fallthru
      _
    %2275 = vsyncpa [#allocation3], 1
    %2276 = vsyncpa [#allocation4], 1

</llo_original>
